<compile_context>
chip_gen: v5e
topology: v5e:2x2
jax: 0.10.0
libtpu: 0.0.40
codegen_flags: <defaults>
</compile_context>

<pallas_src>
import math

import jax
import jax.numpy as jnp
from jax import lax
from jax.experimental import pallas as pl
from jax.experimental.pallas import tpu as pltpu


# dot_general dimension_numbers (no transposes materialized)
_DN_NT = (((1,), (1,)), ((), ()))       # contract last dim of both operands: A @ B^T
_DN_NN = (((1,), (0,)), ((), ()))       # standard A @ B


def _make_mha_kernel(num_head: int, d_k: int, d_v: int):
    def kernel(q_ref, k_ref, v_ref, bias_ref, lw_ref,
               wq_ref, bq_ref, wk_ref, bk_ref, wv_ref, bv_ref,
               wo_ref, bo_ref, o_ref, atte_scr):
        cdt = q_ref.dtype                       # MXU operand dtype (bf16 stays bf16)
        bt, Lq, dq_in = q_ref.shape
        Lk = k_ref.shape[1]
        M = bt * Lq

        # Flatten the packed-batch slab: projections get a big M dimension for the MXU.
        xq = q_ref[...].reshape(M, dq_in)
        xk = k_ref[...].reshape(bt * Lk, k_ref.shape[2])
        xv = v_ref[...].reshape(bt * Lk, v_ref.shape[2])
        lw = lw_ref[...]                        # (Lq, Lk) f32 locality weights (resident)

        # Input projections y = x @ W^T + b (PyTorch Linear: W is [out, in]).
        # 1/sqrt(d_k) is already folded into wq_ref / bq_ref by the wrapper.
        q_all = (lax.dot_general(xq, wq_ref[...], _DN_NT,
                                 preferred_element_type=jnp.float32)
                 + bq_ref[...]).astype(cdt)     # (M, key_size)
        k_all = (lax.dot_general(xk, wk_ref[...], _DN_NT,
                                 preferred_element_type=jnp.float32)
                 + bk_ref[...]).astype(cdt)     # (M, key_size)
        v_all = (lax.dot_general(xv, wv_ref[...], _DN_NT,
                                 preferred_element_type=jnp.float32)
                 + bv_ref[...]).astype(cdt)     # (M, value_size)

        # Per-batch / per-head attention; each head's output is staged into the merged
        # (M, H*d_v) scratch so the Wo projection below runs as one full-depth matmul.
        for b in range(bt):
            bias_b = bias_ref[b]                # (1, Lk) f32 additive mask bias (0 / -1e9)
            r0 = b * Lq
            qb = q_all[r0:r0 + Lq]
            kb = k_all[r0:r0 + Lq]
            vb = v_all[r0:r0 + Lq]
            for h in range(num_head):           # static unroll; see TODO(synk) above
                qh = qb[:, h * d_k:(h + 1) * d_k]               # (Lq, d_k)
                kh = kb[:, h * d_k:(h + 1) * d_k]               # (Lk, d_k)
                vh = vb[:, h * d_v:(h + 1) * d_v]               # (Lk, d_v)

                # scores (scale pre-folded into q projection), mask via broadcast add.
                s = lax.dot_general(qh, kh, _DN_NT,
                                    preferred_element_type=jnp.float32)  # (Lq, Lk) f32
                s = s + bias_b

                # numerically stable softmax in f32 (exact division)
                s = s - jnp.max(s, axis=-1, keepdims=True)
                e = jnp.exp(s)
                p = e / jnp.sum(e, axis=-1, keepdims=True)

                # locality gaussian applied AFTER softmax, no renormalization
                p = p * lw

                oh = lax.dot_general(p.astype(cdt), vh, _DN_NN,
                                     preferred_element_type=jnp.float32)  # (Lq, d_v)
                atte_scr[r0:r0 + Lq, h * d_v:(h + 1) * d_v] = oh.astype(cdt)

        # Single full-width output projection: out = atte @ Wo^T + bo.
        out = (lax.dot_general(atte_scr[...], wo_ref[...], _DN_NT,
                               preferred_element_type=jnp.float32)
               + bo_ref[...])                                   # (M, value_size) f32
        o_ref[...] = out.reshape(bt, Lq, out.shape[-1]).astype(o_ref.dtype)

    return kernel


def local_multi_head_attention(Q, K, V, atte_mask_out, params, num_head, batch_block=None):
    """Forward of LocalMultiHeadAttention (eval mode).

    Q: [B, Lq, query_size]; K: [B, Lk, key_size]; V: [B, Lk, value_size].
    atte_mask_out: [B, 1, Lk] or [B, Lk] with True/1 meaning "mask out", or None.
    params: PyTorch-layout Linear weights wq,bq,wk,bk,wv,bv,wo,bo (W is [out, in]).
    Requires Lq == Lk (the module's relative-position matrix assumes it).
    """
    wq, bq = params["wq"], params["bq"]
    wk, bk = params["wk"], params["bk"]
    wv, bv = params["wv"], params["bv"]
    wo, bo = params["wo"], params["bo"]

    B, Lq, Dq_in = Q.shape
    Lk, Dk_in = K.shape[1], K.shape[2]
    Dv_in = V.shape[2]
    key_size = wq.shape[0]
    value_size = wv.shape[0]
    assert key_size % num_head == 0 and value_size % num_head == 0
    assert Lq == Lk, "local attention requires seq_len_q == seq_len_k"
    d_k = key_size // num_head
    d_v = value_size // num_head
    inv_scale = 1.0 / math.sqrt(d_k)

    # Additive mask bias row (B, 1, Lk): 0 where kept, -1e9 where masked out.
    if atte_mask_out is None:
        mask_bias = jnp.zeros((B, 1, Lk), jnp.float32)
    else:
        assert atte_mask_out.size == B * Lk, (
            "only [B, 1, Lk] / [B, Lk] masks supported")  # TODO(synk): full [B,Lq,Lk] masks
        mbool = atte_mask_out.reshape(B, 1, Lk).astype(bool)
        mask_bias = jnp.where(mbool, jnp.float32(-1.0e9), jnp.float32(0.0))

    # Locality gaussian exp(-(i-j)^2 / (Lk^2/2)): batch/head independent, computed once.
    idx = jnp.arange(Lq, dtype=jnp.float32)
    rel = idx[:, None] - idx[None, :]
    lw = jnp.exp(-(rel * rel) / (float(Lk) * float(Lk) / 2.0)).astype(jnp.float32)

    # MXU operands in the input dtype; 1/sqrt(d_k) folded into the q projection weights.
    cdt = Q.dtype
    wq_c = (wq.astype(jnp.float32) * inv_scale).astype(cdt)
    wk_c = wk.astype(cdt)
    wv_c = wv.astype(cdt)
    wo_c = wo.astype(cdt)
    bq2 = (bq.astype(jnp.float32) * inv_scale).reshape(1, key_size)
    bk2 = bk.astype(jnp.float32).reshape(1, key_size)
    bv2 = bv.astype(jnp.float32).reshape(1, value_size)
    bo2 = bo.astype(jnp.float32).reshape(1, value_size)

    # Pack several batch elements per grid step for short sequences (bigger MXU M dim,
    # fewer grid steps); keep bt a divisor of B.
    if batch_block is None:
        cap = max(1, min(B, 512 // max(Lq, 1)))
        bt = 1
        for c in range(cap, 0, -1):
            if B % c == 0:
                bt = c
                break
    else:
        bt = int(batch_block)
    assert B % bt == 0

    const2d = lambda g: (0, 0)          # weights / biases / locality matrix: VMEM-resident

    out = pl.pallas_call(
        _make_mha_kernel(num_head, d_k, d_v),
        out_shape=jax.ShapeDtypeStruct((B, Lq, value_size), Q.dtype),
        grid_spec=pltpu.PrefetchScalarGridSpec(
            num_scalar_prefetch=0,
            grid=(B // bt,),
            in_specs=[
                pl.BlockSpec((bt, Lq, Dq_in), lambda g: (g, 0, 0)),   # Q
                pl.BlockSpec((bt, Lk, Dk_in), lambda g: (g, 0, 0)),   # K
                pl.BlockSpec((bt, Lk, Dv_in), lambda g: (g, 0, 0)),   # V
                pl.BlockSpec((bt, 1, Lk), lambda g: (g, 0, 0)),       # additive mask bias
                pl.BlockSpec((Lq, Lk), const2d),                      # locality weights
                pl.BlockSpec(wq_c.shape, const2d),                    # Wq (pre-scaled)
                pl.BlockSpec((1, key_size), const2d),                 # bq (pre-scaled)
                pl.BlockSpec(wk_c.shape, const2d),                    # Wk
                pl.BlockSpec((1, key_size), const2d),                 # bk
                pl.BlockSpec(wv_c.shape, const2d),                    # Wv
                pl.BlockSpec((1, value_size), const2d),               # bv
                pl.BlockSpec(wo_c.shape, const2d),                    # Wo
                pl.BlockSpec((1, value_size), const2d),               # bo
            ],
            # Output directly in merged-head [B, Lq, H*d_v] layout (lane-dense).
            out_specs=pl.BlockSpec((bt, Lq, value_size), lambda g: (g, 0, 0)),
            scratch_shapes=[pltpu.VMEM((bt * Lq, value_size), cdt)],  # merged-head staging
        ),
        compiler_params=pltpu.CompilerParams(
            dimension_semantics=("parallel",)),
    )(Q, K, V, mask_bias, lw, wq_c, bq2, wk_c, bk2, wv_c, bv2, wo_c, bo2)

    return out


def _reference(Q, K, V, atte_mask_out, params, num_head):
    """Pure-JAX mirror of the PyTorch LocalMultiHeadAttention forward (eval mode)."""
    wq, bq = params["wq"], params["bq"]
    wk, bk = params["wk"], params["bk"]
    wv, bv = params["wv"], params["bv"]
    wo, bo = params["wo"], params["bo"]

    B, Lq, _ = Q.shape
    Lk = K.shape[1]
    key_size = wq.shape[0]
    value_size = wv.shape[0]
    d_k = key_size // num_head
    d_v = value_size // num_head

    q = (Q @ wq.T + bq).reshape(B, Lq, num_head, d_k).transpose(0, 2, 1, 3)
    k = (K @ wk.T + bk).reshape(B, Lk, num_head, d_k).transpose(0, 2, 1, 3)
    v = (V @ wv.T + bv).reshape(B, Lk, num_head, d_v).transpose(0, 2, 1, 3)

    scores = jnp.matmul(q, jnp.swapaxes(k, -1, -2)) / math.sqrt(d_k)
    if atte_mask_out is not None:
        m = atte_mask_out.reshape(B, 1, 1, Lk).astype(bool)
        scores = jnp.where(m, -1.0e9, scores)          # masked_fill semantics
    probs = jax.nn.softmax(scores, axis=-1)

    idx = jnp.arange(Lq, dtype=jnp.float32)
    rel = jnp.abs(idx[:, None] - idx[None, :])
    lw = jnp.exp(-(rel ** 2) / (float(Lk) ** 2 / 2.0))
    probs = probs * lw                                  # post-softmax locality weight

    atte = jnp.matmul(probs, v)                         # [B, H, Lq, d_v]
    atte = atte.transpose(0, 2, 1, 3).reshape(B, Lq, num_head * d_v)
    return atte @ wo.T + bo


if __name__ == "__main__":
    # Small deterministic shapes consistent with the module's forward.
    B, L = 2, 8
    query_size = key_size = value_size = 32
    num_head = 4

    root = jax.random.PRNGKey(0)
    ks = jax.random.split(root, 12)

    Q = jax.random.normal(ks[0], (B, L, query_size), jnp.float32)
    K = jax.random.normal(ks[1], (B, L, key_size), jnp.float32)
    V = jax.random.normal(ks[2], (B, L, value_size), jnp.float32)
    # boolean mask, True = mask out, native per-key shape [B, 1, Lk]
    atte_mask = jax.random.uniform(ks[3], (B, 1, L)) > 0.7

    params = dict(
        wq=math.sqrt(1.0 / query_size) * jax.random.normal(ks[4], (key_size, query_size), jnp.float32),
        bq=0.1 * jax.random.normal(ks[5], (key_size,), jnp.float32),
        wk=math.sqrt(1.0 / query_size) * jax.random.normal(ks[6], (key_size, key_size), jnp.float32),
        bk=0.1 * jax.random.normal(ks[7], (key_size,), jnp.float32),
        wv=math.sqrt(1.0 / value_size) * jax.random.normal(ks[8], (value_size, value_size), jnp.float32),
        bv=0.1 * jax.random.normal(ks[9], (value_size,), jnp.float32),
        wo=math.sqrt(1.0 / value_size) * jax.random.normal(ks[10], (value_size, value_size), jnp.float32),
        bo=0.1 * jax.random.normal(ks[11], (value_size,), jnp.float32),
    )

    out = local_multi_head_attention(Q, K, V, atte_mask, params, num_head)
    out = jax.block_until_ready(out)

    ref = _reference(Q, K, V, atte_mask, params, num_head)
    assert out.shape == (B, L, value_size)
    # Exact softmax division in-kernel; remaining slack covers MXU f32 matmul passes vs XLA.
    max_err = float(jnp.max(jnp.abs(out - ref)))
    assert jnp.allclose(out, ref, atol=1e-3, rtol=1e-3), (
        "mismatch vs reference, max abs err = %g" % max_err)

    print("KERNEL_OK")
</pallas_src>

<mosaic_0001>
module attributes {stable_mosaic.version = 11 : i64} {
  func.func @kernel(%arg0: i32, %arg1: memref<2x8x32xf32, #tpu.memory_space<vmem>>, %arg2: memref<2x8x32xf32, #tpu.memory_space<vmem>>, %arg3: memref<2x8x32xf32, #tpu.memory_space<vmem>>, %arg4: memref<2x1x8xf32, #tpu.memory_space<vmem>>, %arg5: memref<8x8xf32, #tpu.memory_space<vmem>>, %arg6: memref<32x32xf32, #tpu.memory_space<vmem>>, %arg7: memref<1x32xf32, #tpu.memory_space<vmem>>, %arg8: memref<32x32xf32, #tpu.memory_space<vmem>>, %arg9: memref<1x32xf32, #tpu.memory_space<vmem>>, %arg10: memref<32x32xf32, #tpu.memory_space<vmem>>, %arg11: memref<1x32xf32, #tpu.memory_space<vmem>>, %arg12: memref<32x32xf32, #tpu.memory_space<vmem>>, %arg13: memref<1x32xf32, #tpu.memory_space<vmem>>, %arg14: memref<2x8x32xf32, #tpu.memory_space<vmem>>, %arg15: memref<16x32xf32, #tpu.memory_space<vmem>>) attributes {dimension_semantics = [#tpu.dimension_semantics<parallel>], iteration_bounds = array<i64: 1>, scalar_prefetch = 0 : i64, scratch_operands = 1 : i64, tpu.core_type = #tpu.core_type<tc>, window_params = [{transform_indices = @transform_0, window_bounds = array<i64: 2, 8, 32>}, {transform_indices = @transform_1, window_bounds = array<i64: 2, 8, 32>}, {transform_indices = @transform_2, window_bounds = array<i64: 2, 8, 32>}, {transform_indices = @transform_3, window_bounds = array<i64: 2, 1, 8>}, {pipeline_mode = #tpu.pipeline_mode<synchronous>, transform_indices = @transform_4, window_bounds = array<i64: 8, 8>}, {pipeline_mode = #tpu.pipeline_mode<synchronous>, transform_indices = @transform_5, window_bounds = array<i64: 32, 32>}, {pipeline_mode = #tpu.pipeline_mode<synchronous>, transform_indices = @transform_6, window_bounds = array<i64: 1, 32>}, {pipeline_mode = #tpu.pipeline_mode<synchronous>, transform_indices = @transform_7, window_bounds = array<i64: 32, 32>}, {pipeline_mode = #tpu.pipeline_mode<synchronous>, transform_indices = @transform_8, window_bounds = array<i64: 1, 32>}, {pipeline_mode = #tpu.pipeline_mode<synchronous>, transform_indices = @transform_9, window_bounds = array<i64: 32, 32>}, {pipeline_mode = #tpu.pipeline_mode<synchronous>, transform_indices = @transform_10, window_bounds = array<i64: 1, 32>}, {pipeline_mode = #tpu.pipeline_mode<synchronous>, transform_indices = @transform_11, window_bounds = array<i64: 32, 32>}, {pipeline_mode = #tpu.pipeline_mode<synchronous>, transform_indices = @transform_12, window_bounds = array<i64: 1, 32>}, {transform_indices = @transform_13, window_bounds = array<i64: 2, 8, 32>}]} {
    %c0 = arith.constant 0 : index
    %c0_0 = arith.constant 0 : index
    %c0_1 = arith.constant 0 : index
    %0 = vector.load %arg1[%c0, %c0_0, %c0_1] : memref<2x8x32xf32, #tpu.memory_space<vmem>>, vector<2x8x32xf32>
    %1 = vector.shape_cast %0 : vector<2x8x32xf32> to vector<16x32xf32>
    %c0_2 = arith.constant 0 : index
    %c0_3 = arith.constant 0 : index
    %c0_4 = arith.constant 0 : index
    %2 = vector.load %arg2[%c0_2, %c0_3, %c0_4] : memref<2x8x32xf32, #tpu.memory_space<vmem>>, vector<2x8x32xf32>
    %3 = vector.shape_cast %2 : vector<2x8x32xf32> to vector<16x32xf32>
    %c0_5 = arith.constant 0 : index
    %c0_6 = arith.constant 0 : index
    %c0_7 = arith.constant 0 : index
    %4 = vector.load %arg3[%c0_5, %c0_6, %c0_7] : memref<2x8x32xf32, #tpu.memory_space<vmem>>, vector<2x8x32xf32>
    %5 = vector.shape_cast %4 : vector<2x8x32xf32> to vector<16x32xf32>
    %c0_8 = arith.constant 0 : index
    %c0_9 = arith.constant 0 : index
    %6 = vector.load %arg5[%c0_8, %c0_9] : memref<8x8xf32, #tpu.memory_space<vmem>>, vector<8x8xf32>
    %c0_10 = arith.constant 0 : index
    %c0_11 = arith.constant 0 : index
    %7 = vector.load %arg6[%c0_10, %c0_11] : memref<32x32xf32, #tpu.memory_space<vmem>>, vector<32x32xf32>
    %cst = arith.constant dense<0.000000e+00> : vector<16x32xf32>
    %8 = tpu.matmul %1, %7, %cst {dimension_numbers = #tpu.dot_dimension_numbers<[1], [1], [0], [0], [0, 0, 1, 0], [], []>} : vector<16x32xf32>, vector<32x32xf32>, vector<16x32xf32> -> vector<16x32xf32>
    %c0_12 = arith.constant 0 : index
    %c0_13 = arith.constant 0 : index
    %9 = vector.load %arg7[%c0_12, %c0_13] : memref<1x32xf32, #tpu.memory_space<vmem>>, vector<1x32xf32>
    %10 = vector.broadcast %9 : vector<1x32xf32> to vector<16x32xf32>
    %11 = arith.addf %8, %10 : vector<16x32xf32>
    %c0_14 = arith.constant 0 : index
    %c0_15 = arith.constant 0 : index
    %12 = vector.load %arg8[%c0_14, %c0_15] : memref<32x32xf32, #tpu.memory_space<vmem>>, vector<32x32xf32>
    %cst_16 = arith.constant dense<0.000000e+00> : vector<16x32xf32>
    %13 = tpu.matmul %3, %12, %cst_16 {dimension_numbers = #tpu.dot_dimension_numbers<[1], [1], [0], [0], [0, 0, 1, 0], [], []>} : vector<16x32xf32>, vector<32x32xf32>, vector<16x32xf32> -> vector<16x32xf32>
    %c0_17 = arith.constant 0 : index
    %c0_18 = arith.constant 0 : index
    %14 = vector.load %arg9[%c0_17, %c0_18] : memref<1x32xf32, #tpu.memory_space<vmem>>, vector<1x32xf32>
    %15 = vector.broadcast %14 : vector<1x32xf32> to vector<16x32xf32>
    %16 = arith.addf %13, %15 : vector<16x32xf32>
    %c0_19 = arith.constant 0 : index
    %c0_20 = arith.constant 0 : index
    %17 = vector.load %arg10[%c0_19, %c0_20] : memref<32x32xf32, #tpu.memory_space<vmem>>, vector<32x32xf32>
    %cst_21 = arith.constant dense<0.000000e+00> : vector<16x32xf32>
    %18 = tpu.matmul %5, %17, %cst_21 {dimension_numbers = #tpu.dot_dimension_numbers<[1], [1], [0], [0], [0, 0, 1, 0], [], []>} : vector<16x32xf32>, vector<32x32xf32>, vector<16x32xf32> -> vector<16x32xf32>
    %c0_22 = arith.constant 0 : index
    %c0_23 = arith.constant 0 : index
    %19 = vector.load %arg11[%c0_22, %c0_23] : memref<1x32xf32, #tpu.memory_space<vmem>>, vector<1x32xf32>
    %20 = vector.broadcast %19 : vector<1x32xf32> to vector<16x32xf32>
    %21 = arith.addf %18, %20 : vector<16x32xf32>
    %c0_24 = arith.constant 0 : index
    %c0_25 = arith.constant 0 : index
    %c0_26 = arith.constant 0 : index
    %22 = vector.load %arg4[%c0_24, %c0_25, %c0_26] : memref<2x1x8xf32, #tpu.memory_space<vmem>>, vector<1x1x8xf32>
    %23 = vector.shape_cast %22 : vector<1x1x8xf32> to vector<1x8xf32>
    %24 = vector.extract_strided_slice %11 {offsets = [0, 0], sizes = [8, 32], strides = [1, 1]} : vector<16x32xf32> to vector<8x32xf32>
    %25 = vector.extract_strided_slice %16 {offsets = [0, 0], sizes = [8, 32], strides = [1, 1]} : vector<16x32xf32> to vector<8x32xf32>
    %26 = vector.extract_strided_slice %21 {offsets = [0, 0], sizes = [8, 32], strides = [1, 1]} : vector<16x32xf32> to vector<8x32xf32>
    %27 = vector.extract_strided_slice %24 {offsets = [0, 0], sizes = [8, 8], strides = [1, 1]} : vector<8x32xf32> to vector<8x8xf32>
    %28 = vector.extract_strided_slice %25 {offsets = [0, 0], sizes = [8, 8], strides = [1, 1]} : vector<8x32xf32> to vector<8x8xf32>
    %29 = vector.extract_strided_slice %26 {offsets = [0, 0], sizes = [8, 8], strides = [1, 1]} : vector<8x32xf32> to vector<8x8xf32>
    %cst_27 = arith.constant dense<0.000000e+00> : vector<8x8xf32>
    %30 = tpu.matmul %27, %28, %cst_27 {dimension_numbers = #tpu.dot_dimension_numbers<[1], [1], [0], [0], [0, 0, 1, 0], [], []>} : vector<8x8xf32>, vector<8x8xf32>, vector<8x8xf32> -> vector<8x8xf32>
    %31 = vector.broadcast %23 : vector<1x8xf32> to vector<8x8xf32>
    %32 = arith.addf %30, %31 : vector<8x8xf32>
    %cst_28 = arith.constant dense<0xFF800000> : vector<8xf32>
    %33 = vector.multi_reduction <maximumf>, %32, %cst_28 [1] : vector<8x8xf32> to vector<8xf32>
    %34 = vector.shape_cast %33 : vector<8xf32> to vector<8x1xf32>
    %35 = vector.broadcast %34 : vector<8x1xf32> to vector<8x8xf32>
    %36 = arith.subf %32, %35 : vector<8x8xf32>
    %37 = math.exp %36 : vector<8x8xf32>
    %cst_29 = arith.constant dense<0.000000e+00> : vector<8xf32>
    %38 = vector.multi_reduction <add>, %37, %cst_29 [1] : vector<8x8xf32> to vector<8xf32>
    %39 = vector.shape_cast %38 : vector<8xf32> to vector<8x1xf32>
    %40 = vector.broadcast %39 : vector<8x1xf32> to vector<8x8xf32>
    %41 = arith.divf %37, %40 : vector<8x8xf32>
    %42 = arith.mulf %41, %6 : vector<8x8xf32>
    %cst_30 = arith.constant dense<0.000000e+00> : vector<8x8xf32>
    %43 = tpu.matmul %42, %29, %cst_30 {dimension_numbers = #tpu.dot_dimension_numbers<[1], [0], [0], [1], [0, 0, 1, 1], [], []>} : vector<8x8xf32>, vector<8x8xf32>, vector<8x8xf32> -> vector<8x8xf32>
    %c0_31 = arith.constant 0 : index
    %c0_32 = arith.constant 0 : index
    %44 = vector.load %arg15[%c0_31, %c0_32] : memref<16x32xf32, #tpu.memory_space<vmem>>, vector<8x8xf32>
    tpu.vector_store %arg15[%c0_31, %c0_32], %43 {strides = array<i32>} : memref<16x32xf32, #tpu.memory_space<vmem>>, vector<8x8xf32>,
    %45 = vector.extract_strided_slice %24 {offsets = [0, 8], sizes = [8, 8], strides = [1, 1]} : vector<8x32xf32> to vector<8x8xf32>
    %46 = vector.extract_strided_slice %25 {offsets = [0, 8], sizes = [8, 8], strides = [1, 1]} : vector<8x32xf32> to vector<8x8xf32>
    %47 = vector.extract_strided_slice %26 {offsets = [0, 8], sizes = [8, 8], strides = [1, 1]} : vector<8x32xf32> to vector<8x8xf32>
    %cst_33 = arith.constant dense<0.000000e+00> : vector<8x8xf32>
    %48 = tpu.matmul %45, %46, %cst_33 {dimension_numbers = #tpu.dot_dimension_numbers<[1], [1], [0], [0], [0, 0, 1, 0], [], []>} : vector<8x8xf32>, vector<8x8xf32>, vector<8x8xf32> -> vector<8x8xf32>
    %49 = vector.broadcast %23 : vector<1x8xf32> to vector<8x8xf32>
    %50 = arith.addf %48, %49 : vector<8x8xf32>
    %cst_34 = arith.constant dense<0xFF800000> : vector<8xf32>
    %51 = vector.multi_reduction <maximumf>, %50, %cst_34 [1] : vector<8x8xf32> to vector<8xf32>
    %52 = vector.shape_cast %51 : vector<8xf32> to vector<8x1xf32>
    %53 = vector.broadcast %52 : vector<8x1xf32> to vector<8x8xf32>
    %54 = arith.subf %50, %53 : vector<8x8xf32>
    %55 = math.exp %54 : vector<8x8xf32>
    %cst_35 = arith.constant dense<0.000000e+00> : vector<8xf32>
    %56 = vector.multi_reduction <add>, %55, %cst_35 [1] : vector<8x8xf32> to vector<8xf32>
    %57 = vector.shape_cast %56 : vector<8xf32> to vector<8x1xf32>
    %58 = vector.broadcast %57 : vector<8x1xf32> to vector<8x8xf32>
    %59 = arith.divf %55, %58 : vector<8x8xf32>
    %60 = arith.mulf %59, %6 : vector<8x8xf32>
    %cst_36 = arith.constant dense<0.000000e+00> : vector<8x8xf32>
    %61 = tpu.matmul %60, %47, %cst_36 {dimension_numbers = #tpu.dot_dimension_numbers<[1], [0], [0], [1], [0, 0, 1, 1], [], []>} : vector<8x8xf32>, vector<8x8xf32>, vector<8x8xf32> -> vector<8x8xf32>
    %c0_37 = arith.constant 0 : index
    %c8 = arith.constant 8 : index
    %62 = vector.load %arg15[%c0_37, %c8] : memref<16x32xf32, #tpu.memory_space<vmem>>, vector<8x8xf32>
    tpu.vector_store %arg15[%c0_37, %c8], %61 {strides = array<i32>} : memref<16x32xf32, #tpu.memory_space<vmem>>, vector<8x8xf32>,
    %63 = vector.extract_strided_slice %24 {offsets = [0, 16], sizes = [8, 8], strides = [1, 1]} : vector<8x32xf32> to vector<8x8xf32>
    %64 = vector.extract_strided_slice %25 {offsets = [0, 16], sizes = [8, 8], strides = [1, 1]} : vector<8x32xf32> to vector<8x8xf32>
    %65 = vector.extract_strided_slice %26 {offsets = [0, 16], sizes = [8, 8], strides = [1, 1]} : vector<8x32xf32> to vector<8x8xf32>
    %cst_38 = arith.constant dense<0.000000e+00> : vector<8x8xf32>
    %66 = tpu.matmul %63, %64, %cst_38 {dimension_numbers = #tpu.dot_dimension_numbers<[1], [1], [0], [0], [0, 0, 1, 0], [], []>} : vector<8x8xf32>, vector<8x8xf32>, vector<8x8xf32> -> vector<8x8xf32>
    %67 = vector.broadcast %23 : vector<1x8xf32> to vector<8x8xf32>
    %68 = arith.addf %66, %67 : vector<8x8xf32>
    %cst_39 = arith.constant dense<0xFF800000> : vector<8xf32>
    %69 = vector.multi_reduction <maximumf>, %68, %cst_39 [1] : vector<8x8xf32> to vector<8xf32>
    %70 = vector.shape_cast %69 : vector<8xf32> to vector<8x1xf32>
    %71 = vector.broadcast %70 : vector<8x1xf32> to vector<8x8xf32>
    %72 = arith.subf %68, %71 : vector<8x8xf32>
    %73 = math.exp %72 : vector<8x8xf32>
    %cst_40 = arith.constant dense<0.000000e+00> : vector<8xf32>
    %74 = vector.multi_reduction <add>, %73, %cst_40 [1] : vector<8x8xf32> to vector<8xf32>
    %75 = vector.shape_cast %74 : vector<8xf32> to vector<8x1xf32>
    %76 = vector.broadcast %75 : vector<8x1xf32> to vector<8x8xf32>
    %77 = arith.divf %73, %76 : vector<8x8xf32>
    %78 = arith.mulf %77, %6 : vector<8x8xf32>
    %cst_41 = arith.constant dense<0.000000e+00> : vector<8x8xf32>
    %79 = tpu.matmul %78, %65, %cst_41 {dimension_numbers = #tpu.dot_dimension_numbers<[1], [0], [0], [1], [0, 0, 1, 1], [], []>} : vector<8x8xf32>, vector<8x8xf32>, vector<8x8xf32> -> vector<8x8xf32>
    %c0_42 = arith.constant 0 : index
    %c16 = arith.constant 16 : index
    %80 = vector.load %arg15[%c0_42, %c16] : memref<16x32xf32, #tpu.memory_space<vmem>>, vector<8x8xf32>
    tpu.vector_store %arg15[%c0_42, %c16], %79 {strides = array<i32>} : memref<16x32xf32, #tpu.memory_space<vmem>>, vector<8x8xf32>,
    %81 = vector.extract_strided_slice %24 {offsets = [0, 24], sizes = [8, 8], strides = [1, 1]} : vector<8x32xf32> to vector<8x8xf32>
    %82 = vector.extract_strided_slice %25 {offsets = [0, 24], sizes = [8, 8], strides = [1, 1]} : vector<8x32xf32> to vector<8x8xf32>
    %83 = vector.extract_strided_slice %26 {offsets = [0, 24], sizes = [8, 8], strides = [1, 1]} : vector<8x32xf32> to vector<8x8xf32>
    %cst_43 = arith.constant dense<0.000000e+00> : vector<8x8xf32>
    %84 = tpu.matmul %81, %82, %cst_43 {dimension_numbers = #tpu.dot_dimension_numbers<[1], [1], [0], [0], [0, 0, 1, 0], [], []>} : vector<8x8xf32>, vector<8x8xf32>, vector<8x8xf32> -> vector<8x8xf32>
    %85 = vector.broadcast %23 : vector<1x8xf32> to vector<8x8xf32>
    %86 = arith.addf %84, %85 : vector<8x8xf32>
    %cst_44 = arith.constant dense<0xFF800000> : vector<8xf32>
    %87 = vector.multi_reduction <maximumf>, %86, %cst_44 [1] : vector<8x8xf32> to vector<8xf32>
    %88 = vector.shape_cast %87 : vector<8xf32> to vector<8x1xf32>
    %89 = vector.broadcast %88 : vector<8x1xf32> to vector<8x8xf32>
    %90 = arith.subf %86, %89 : vector<8x8xf32>
    %91 = math.exp %90 : vector<8x8xf32>
    %cst_45 = arith.constant dense<0.000000e+00> : vector<8xf32>
    %92 = vector.multi_reduction <add>, %91, %cst_45 [1] : vector<8x8xf32> to vector<8xf32>
    %93 = vector.shape_cast %92 : vector<8xf32> to vector<8x1xf32>
    %94 = vector.broadcast %93 : vector<8x1xf32> to vector<8x8xf32>
    %95 = arith.divf %91, %94 : vector<8x8xf32>
    %96 = arith.mulf %95, %6 : vector<8x8xf32>
    %cst_46 = arith.constant dense<0.000000e+00> : vector<8x8xf32>
    %97 = tpu.matmul %96, %83, %cst_46 {dimension_numbers = #tpu.dot_dimension_numbers<[1], [0], [0], [1], [0, 0, 1, 1], [], []>} : vector<8x8xf32>, vector<8x8xf32>, vector<8x8xf32> -> vector<8x8xf32>
    %c0_47 = arith.constant 0 : index
    %c24 = arith.constant 24 : index
    %98 = vector.load %arg15[%c0_47, %c24] : memref<16x32xf32, #tpu.memory_space<vmem>>, vector<8x8xf32>
    tpu.vector_store %arg15[%c0_47, %c24], %97 {strides = array<i32>} : memref<16x32xf32, #tpu.memory_space<vmem>>, vector<8x8xf32>,
    %c1 = arith.constant 1 : index
    %c0_48 = arith.constant 0 : index
    %c0_49 = arith.constant 0 : index
    %99 = vector.load %arg4[%c1, %c0_48, %c0_49] : memref<2x1x8xf32, #tpu.memory_space<vmem>>, vector<1x1x8xf32>
    %100 = vector.shape_cast %99 : vector<1x1x8xf32> to vector<1x8xf32>
    %101 = vector.extract_strided_slice %11 {offsets = [8, 0], sizes = [8, 32], strides = [1, 1]} : vector<16x32xf32> to vector<8x32xf32>
    %102 = vector.extract_strided_slice %16 {offsets = [8, 0], sizes = [8, 32], strides = [1, 1]} : vector<16x32xf32> to vector<8x32xf32>
    %103 = vector.extract_strided_slice %21 {offsets = [8, 0], sizes = [8, 32], strides = [1, 1]} : vector<16x32xf32> to vector<8x32xf32>
    %104 = vector.extract_strided_slice %101 {offsets = [0, 0], sizes = [8, 8], strides = [1, 1]} : vector<8x32xf32> to vector<8x8xf32>
    %105 = vector.extract_strided_slice %102 {offsets = [0, 0], sizes = [8, 8], strides = [1, 1]} : vector<8x32xf32> to vector<8x8xf32>
    %106 = vector.extract_strided_slice %103 {offsets = [0, 0], sizes = [8, 8], strides = [1, 1]} : vector<8x32xf32> to vector<8x8xf32>
    %cst_50 = arith.constant dense<0.000000e+00> : vector<8x8xf32>
    %107 = tpu.matmul %104, %105, %cst_50 {dimension_numbers = #tpu.dot_dimension_numbers<[1], [1], [0], [0], [0, 0, 1, 0], [], []>} : vector<8x8xf32>, vector<8x8xf32>, vector<8x8xf32> -> vector<8x8xf32>
    %108 = vector.broadcast %100 : vector<1x8xf32> to vector<8x8xf32>
    %109 = arith.addf %107, %108 : vector<8x8xf32>
    %cst_51 = arith.constant dense<0xFF800000> : vector<8xf32>
    %110 = vector.multi_reduction <maximumf>, %109, %cst_51 [1] : vector<8x8xf32> to vector<8xf32>
    %111 = vector.shape_cast %110 : vector<8xf32> to vector<8x1xf32>
    %112 = vector.broadcast %111 : vector<8x1xf32> to vector<8x8xf32>
    %113 = arith.subf %109, %112 : vector<8x8xf32>
    %114 = math.exp %113 : vector<8x8xf32>
    %cst_52 = arith.constant dense<0.000000e+00> : vector<8xf32>
    %115 = vector.multi_reduction <add>, %114, %cst_52 [1] : vector<8x8xf32> to vector<8xf32>
    %116 = vector.shape_cast %115 : vector<8xf32> to vector<8x1xf32>
    %117 = vector.broadcast %116 : vector<8x1xf32> to vector<8x8xf32>
    %118 = arith.divf %114, %117 : vector<8x8xf32>
    %119 = arith.mulf %118, %6 : vector<8x8xf32>
    %cst_53 = arith.constant dense<0.000000e+00> : vector<8x8xf32>
    %120 = tpu.matmul %119, %106, %cst_53 {dimension_numbers = #tpu.dot_dimension_numbers<[1], [0], [0], [1], [0, 0, 1, 1], [], []>} : vector<8x8xf32>, vector<8x8xf32>, vector<8x8xf32> -> vector<8x8xf32>
    %c8_54 = arith.constant 8 : index
    %c0_55 = arith.constant 0 : index
    %121 = vector.load %arg15[%c8_54, %c0_55] : memref<16x32xf32, #tpu.memory_space<vmem>>, vector<8x8xf32>
    tpu.vector_store %arg15[%c8_54, %c0_55], %120 {strides = array<i32>} : memref<16x32xf32, #tpu.memory_space<vmem>>, vector<8x8xf32>,
    %122 = vector.extract_strided_slice %101 {offsets = [0, 8], sizes = [8, 8], strides = [1, 1]} : vector<8x32xf32> to vector<8x8xf32>
    %123 = vector.extract_strided_slice %102 {offsets = [0, 8], sizes = [8, 8], strides = [1, 1]} : vector<8x32xf32> to vector<8x8xf32>
    %124 = vector.extract_strided_slice %103 {offsets = [0, 8], sizes = [8, 8], strides = [1, 1]} : vector<8x32xf32> to vector<8x8xf32>
    %cst_56 = arith.constant dense<0.000000e+00> : vector<8x8xf32>
    %125 = tpu.matmul %122, %123, %cst_56 {dimension_numbers = #tpu.dot_dimension_numbers<[1], [1], [0], [0], [0, 0, 1, 0], [], []>} : vector<8x8xf32>, vector<8x8xf32>, vector<8x8xf32> -> vector<8x8xf32>
    %126 = vector.broadcast %100 : vector<1x8xf32> to vector<8x8xf32>
    %127 = arith.addf %125, %126 : vector<8x8xf32>
    %cst_57 = arith.constant dense<0xFF800000> : vector<8xf32>
    %128 = vector.multi_reduction <maximumf>, %127, %cst_57 [1] : vector<8x8xf32> to vector<8xf32>
    %129 = vector.shape_cast %128 : vector<8xf32> to vector<8x1xf32>
    %130 = vector.broadcast %129 : vector<8x1xf32> to vector<8x8xf32>
    %131 = arith.subf %127, %130 : vector<8x8xf32>
    %132 = math.exp %131 : vector<8x8xf32>
    %cst_58 = arith.constant dense<0.000000e+00> : vector<8xf32>
    %133 = vector.multi_reduction <add>, %132, %cst_58 [1] : vector<8x8xf32> to vector<8xf32>
    %134 = vector.shape_cast %133 : vector<8xf32> to vector<8x1xf32>
    %135 = vector.broadcast %134 : vector<8x1xf32> to vector<8x8xf32>
    %136 = arith.divf %132, %135 : vector<8x8xf32>
    %137 = arith.mulf %136, %6 : vector<8x8xf32>
    %cst_59 = arith.constant dense<0.000000e+00> : vector<8x8xf32>
    %138 = tpu.matmul %137, %124, %cst_59 {dimension_numbers = #tpu.dot_dimension_numbers<[1], [0], [0], [1], [0, 0, 1, 1], [], []>} : vector<8x8xf32>, vector<8x8xf32>, vector<8x8xf32> -> vector<8x8xf32>
    %c8_60 = arith.constant 8 : index
    %c8_61 = arith.constant 8 : index
    %139 = vector.load %arg15[%c8_60, %c8_61] : memref<16x32xf32, #tpu.memory_space<vmem>>, vector<8x8xf32>
    tpu.vector_store %arg15[%c8_60, %c8_61], %138 {strides = array<i32>} : memref<16x32xf32, #tpu.memory_space<vmem>>, vector<8x8xf32>,
    %140 = vector.extract_strided_slice %101 {offsets = [0, 16], sizes = [8, 8], strides = [1, 1]} : vector<8x32xf32> to vector<8x8xf32>
    %141 = vector.extract_strided_slice %102 {offsets = [0, 16], sizes = [8, 8], strides = [1, 1]} : vector<8x32xf32> to vector<8x8xf32>
    %142 = vector.extract_strided_slice %103 {offsets = [0, 16], sizes = [8, 8], strides = [1, 1]} : vector<8x32xf32> to vector<8x8xf32>
    %cst_62 = arith.constant dense<0.000000e+00> : vector<8x8xf32>
    %143 = tpu.matmul %140, %141, %cst_62 {dimension_numbers = #tpu.dot_dimension_numbers<[1], [1], [0], [0], [0, 0, 1, 0], [], []>} : vector<8x8xf32>, vector<8x8xf32>, vector<8x8xf32> -> vector<8x8xf32>
    %144 = vector.broadcast %100 : vector<1x8xf32> to vector<8x8xf32>
    %145 = arith.addf %143, %144 : vector<8x8xf32>
    %cst_63 = arith.constant dense<0xFF800000> : vector<8xf32>
    %146 = vector.multi_reduction <maximumf>, %145, %cst_63 [1] : vector<8x8xf32> to vector<8xf32>
    %147 = vector.shape_cast %146 : vector<8xf32> to vector<8x1xf32>
    %148 = vector.broadcast %147 : vector<8x1xf32> to vector<8x8xf32>
    %149 = arith.subf %145, %148 : vector<8x8xf32>
    %150 = math.exp %149 : vector<8x8xf32>
    %cst_64 = arith.constant dense<0.000000e+00> : vector<8xf32>
    %151 = vector.multi_reduction <add>, %150, %cst_64 [1] : vector<8x8xf32> to vector<8xf32>
    %152 = vector.shape_cast %151 : vector<8xf32> to vector<8x1xf32>
    %153 = vector.broadcast %152 : vector<8x1xf32> to vector<8x8xf32>
    %154 = arith.divf %150, %153 : vector<8x8xf32>
    %155 = arith.mulf %154, %6 : vector<8x8xf32>
    %cst_65 = arith.constant dense<0.000000e+00> : vector<8x8xf32>
    %156 = tpu.matmul %155, %142, %cst_65 {dimension_numbers = #tpu.dot_dimension_numbers<[1], [0], [0], [1], [0, 0, 1, 1], [], []>} : vector<8x8xf32>, vector<8x8xf32>, vector<8x8xf32> -> vector<8x8xf32>
    %c8_66 = arith.constant 8 : index
    %c16_67 = arith.constant 16 : index
    %157 = vector.load %arg15[%c8_66, %c16_67] : memref<16x32xf32, #tpu.memory_space<vmem>>, vector<8x8xf32>
    tpu.vector_store %arg15[%c8_66, %c16_67], %156 {strides = array<i32>} : memref<16x32xf32, #tpu.memory_space<vmem>>, vector<8x8xf32>,
    %158 = vector.extract_strided_slice %101 {offsets = [0, 24], sizes = [8, 8], strides = [1, 1]} : vector<8x32xf32> to vector<8x8xf32>
    %159 = vector.extract_strided_slice %102 {offsets = [0, 24], sizes = [8, 8], strides = [1, 1]} : vector<8x32xf32> to vector<8x8xf32>
    %160 = vector.extract_strided_slice %103 {offsets = [0, 24], sizes = [8, 8], strides = [1, 1]} : vector<8x32xf32> to vector<8x8xf32>
    %cst_68 = arith.constant dense<0.000000e+00> : vector<8x8xf32>
    %161 = tpu.matmul %158, %159, %cst_68 {dimension_numbers = #tpu.dot_dimension_numbers<[1], [1], [0], [0], [0, 0, 1, 0], [], []>} : vector<8x8xf32>, vector<8x8xf32>, vector<8x8xf32> -> vector<8x8xf32>
    %162 = vector.broadcast %100 : vector<1x8xf32> to vector<8x8xf32>
    %163 = arith.addf %161, %162 : vector<8x8xf32>
    %cst_69 = arith.constant dense<0xFF800000> : vector<8xf32>
    %164 = vector.multi_reduction <maximumf>, %163, %cst_69 [1] : vector<8x8xf32> to vector<8xf32>
    %165 = vector.shape_cast %164 : vector<8xf32> to vector<8x1xf32>
    %166 = vector.broadcast %165 : vector<8x1xf32> to vector<8x8xf32>
    %167 = arith.subf %163, %166 : vector<8x8xf32>
    %168 = math.exp %167 : vector<8x8xf32>
    %cst_70 = arith.constant dense<0.000000e+00> : vector<8xf32>
    %169 = vector.multi_reduction <add>, %168, %cst_70 [1] : vector<8x8xf32> to vector<8xf32>
    %170 = vector.shape_cast %169 : vector<8xf32> to vector<8x1xf32>
    %171 = vector.broadcast %170 : vector<8x1xf32> to vector<8x8xf32>
    %172 = arith.divf %168, %171 : vector<8x8xf32>
    %173 = arith.mulf %172, %6 : vector<8x8xf32>
    %cst_71 = arith.constant dense<0.000000e+00> : vector<8x8xf32>
    %174 = tpu.matmul %173, %160, %cst_71 {dimension_numbers = #tpu.dot_dimension_numbers<[1], [0], [0], [1], [0, 0, 1, 1], [], []>} : vector<8x8xf32>, vector<8x8xf32>, vector<8x8xf32> -> vector<8x8xf32>
    %c8_72 = arith.constant 8 : index
    %c24_73 = arith.constant 24 : index
    %175 = vector.load %arg15[%c8_72, %c24_73] : memref<16x32xf32, #tpu.memory_space<vmem>>, vector<8x8xf32>
    tpu.vector_store %arg15[%c8_72, %c24_73], %174 {strides = array<i32>} : memref<16x32xf32, #tpu.memory_space<vmem>>, vector<8x8xf32>,
    %c0_74 = arith.constant 0 : index
    %c0_75 = arith.constant 0 : index
    %176 = vector.load %arg15[%c0_74, %c0_75] : memref<16x32xf32, #tpu.memory_space<vmem>>, vector<16x32xf32>
    %c0_76 = arith.constant 0 : index
    %c0_77 = arith.constant 0 : index
    %177 = vector.load %arg12[%c0_76, %c0_77] : memref<32x32xf32, #tpu.memory_space<vmem>>, vector<32x32xf32>
    %cst_78 = arith.constant dense<0.000000e+00> : vector<16x32xf32>
    %178 = tpu.matmul %176, %177, %cst_78 {dimension_numbers = #tpu.dot_dimension_numbers<[1], [1], [0], [0], [0, 0, 1, 0], [], []>} : vector<16x32xf32>, vector<32x32xf32>, vector<16x32xf32> -> vector<16x32xf32>
    %c0_79 = arith.constant 0 : index
    %c0_80 = arith.constant 0 : index
    %179 = vector.load %arg13[%c0_79, %c0_80] : memref<1x32xf32, #tpu.memory_space<vmem>>, vector<1x32xf32>
    %180 = vector.broadcast %179 : vector<1x32xf32> to vector<16x32xf32>
    %181 = arith.addf %178, %180 : vector<16x32xf32>
    %182 = vector.shape_cast %181 : vector<16x32xf32> to vector<2x8x32xf32>
    %c0_81 = arith.constant 0 : index
    %c0_82 = arith.constant 0 : index
    %c0_83 = arith.constant 0 : index
    %183 = vector.load %arg14[%c0_81, %c0_82, %c0_83] : memref<2x8x32xf32, #tpu.memory_space<vmem>>, vector<2x8x32xf32>
    tpu.vector_store %arg14[%c0_81, %c0_82, %c0_83], %182 {strides = array<i32>} : memref<2x8x32xf32, #tpu.memory_space<vmem>>, vector<2x8x32xf32>,
    return
  }
  func.func @transform_0(%arg0: i32) -> (i32, i32, i32) {
    %c0_i32 = arith.constant 0 : i32
    %c0_i32_0 = arith.constant 0 : i32
    %c0_i32_1 = arith.constant 0 : i32
    return %arg0, %c0_i32, %c0_i32_0 : i32, i32, i32
  }
  func.func @transform_1(%arg0: i32) -> (i32, i32, i32) {
    %c0_i32 = arith.constant 0 : i32
    %c0_i32_0 = arith.constant 0 : i32
    %c0_i32_1 = arith.constant 0 : i32
    return %arg0, %c0_i32, %c0_i32_0 : i32, i32, i32
  }
  func.func @transform_2(%arg0: i32) -> (i32, i32, i32) {
    %c0_i32 = arith.constant 0 : i32
    %c0_i32_0 = arith.constant 0 : i32
    %c0_i32_1 = arith.constant 0 : i32
    return %arg0, %c0_i32, %c0_i32_0 : i32, i32, i32
  }
  func.func @transform_3(%arg0: i32) -> (i32, i32, i32) {
    %c0_i32 = arith.constant 0 : i32
    %c0_i32_0 = arith.constant 0 : i32
    %c0_i32_1 = arith.constant 0 : i32
    return %arg0, %c0_i32, %c0_i32_0 : i32, i32, i32
  }
  func.func @transform_4(%arg0: i32) -> (i32, i32) {
    %c0_i32 = arith.constant 0 : i32
    %c0_i32_0 = arith.constant 0 : i32
    %c0_i32_1 = arith.constant 0 : i32
    return %c0_i32, %c0_i32_0 : i32, i32
  }
  func.func @transform_5(%arg0: i32) -> (i32, i32) {
    %c0_i32 = arith.constant 0 : i32
    %c0_i32_0 = arith.constant 0 : i32
    %c0_i32_1 = arith.constant 0 : i32
    return %c0_i32, %c0_i32_0 : i32, i32
  }
  func.func @transform_6(%arg0: i32) -> (i32, i32) {
    %c0_i32 = arith.constant 0 : i32
    %c0_i32_0 = arith.constant 0 : i32
    %c0_i32_1 = arith.constant 0 : i32
    return %c0_i32, %c0_i32_0 : i32, i32
  }
  func.func @transform_7(%arg0: i32) -> (i32, i32) {
    %c0_i32 = arith.constant 0 : i32
    %c0_i32_0 = arith.constant 0 : i32
    %c0_i32_1 = arith.constant 0 : i32
    return %c0_i32, %c0_i32_0 : i32, i32
  }
  func.func @transform_8(%arg0: i32) -> (i32, i32) {
    %c0_i32 = arith.constant 0 : i32
    %c0_i32_0 = arith.constant 0 : i32
    %c0_i32_1 = arith.constant 0 : i32
    return %c0_i32, %c0_i32_0 : i32, i32
  }
  func.func @transform_9(%arg0: i32) -> (i32, i32) {
    %c0_i32 = arith.constant 0 : i32
    %c0_i32_0 = arith.constant 0 : i32
    %c0_i32_1 = arith.constant 0 : i32
    return %c0_i32, %c0_i32_0 : i32, i32
  }
  func.func @transform_10(%arg0: i32) -> (i32, i32) {
    %c0_i32 = arith.constant 0 : i32
    %c0_i32_0 = arith.constant 0 : i32
    %c0_i32_1 = arith.constant 0 : i32
    return %c0_i32, %c0_i32_0 : i32, i32
  }
  func.func @transform_11(%arg0: i32) -> (i32, i32) {
    %c0_i32 = arith.constant 0 : i32
    %c0_i32_0 = arith.constant 0 : i32
    %c0_i32_1 = arith.constant 0 : i32
    return %c0_i32, %c0_i32_0 : i32, i32
  }
  func.func @transform_12(%arg0: i32) -> (i32, i32) {
    %c0_i32 = arith.constant 0 : i32
    %c0_i32_0 = arith.constant 0 : i32
    %c0_i32_1 = arith.constant 0 : i32
    return %c0_i32, %c0_i32_0 : i32, i32
  }
  func.func @transform_13(%arg0: i32) -> (i32, i32, i32) {
    %c0_i32 = arith.constant 0 : i32
    %c0_i32_0 = arith.constant 0 : i32
    %c0_i32_1 = arith.constant 0 : i32
    return %arg0, %c0_i32, %c0_i32_0 : i32, i32, i32
  }
}

</mosaic_0001>

<llo_original>
// kernel: tpu_custom_call.1
$region0: #{tpu_custom_call.1}
  #allocation0 [shape = 'u32[]', space=smem, size = 0x4, offset = 0x4, fixed_abs, tag = 'smem constant byte address 0x4 - core index']
  #allocation1 [shape = 'u32[72,128]{1,0:T(1,128)}', space=vmem, size = 0x9000, scoped, tag = 'internal scratch']
  #allocation2 [shape = 'f32[16,32]{1,0:T(8,128)}', space=vmem, size = 0x2000, scoped, tag = 'scratch operand']
  %s0 = inlined_call_operand.hbm [shape: f32[2,8,32], index: 0, kind: input, shape index: {}]
  %s1 = inlined_call_operand.hbm [shape: f32[2,8,32], index: 1, kind: input, shape index: {}]
  %s2 = inlined_call_operand.hbm [shape: f32[2,8,32], index: 2, kind: input, shape index: {}]
  %s3 = inlined_call_operand.vmem [shape: f32[2,1,8], index: 3, kind: input, shape index: {}]
  %s4 = inlined_call_operand.hbm [shape: f32[8,8], index: 4, kind: input, shape index: {}]
  %s5 = inlined_call_operand.hbm [shape: f32[32,32], index: 5, kind: input, shape index: {}]
  %s6 = inlined_call_operand.vmem [shape: f32[1,32], index: 6, kind: input, shape index: {}]
  %s7 = inlined_call_operand.hbm [shape: f32[32,32], index: 7, kind: input, shape index: {}]
  %s8 = inlined_call_operand.vmem [shape: f32[1,32], index: 8, kind: input, shape index: {}]
  %s9 = inlined_call_operand.hbm [shape: f32[32,32], index: 9, kind: input, shape index: {}]
  %s10 = inlined_call_operand.vmem [shape: f32[1,32], index: 10, kind: input, shape index: {}]
  %s11 = inlined_call_operand.hbm [shape: f32[32,32], index: 11, kind: input, shape index: {}]
  %s12 = inlined_call_operand.vmem [shape: f32[1,32], index: 12, kind: input, shape index: {}]
  %s13 = inlined_call_operand.hbm [shape: f32[2,8,32], index: 13, kind: output, shape index: {}]
  %s14 = sld [smem:[#allocation0]]
  $region94: #{tpu_custom_call.1} parent=0
    _
  %s16 = ssub.s32 1, %s14
  %s17 = scalar_select 0, %s16, %s14
  $region1: #{tpu_custom_call.1} parent=0
    #allocation3 [shape = 'u8[8192]{0}', space=vmem, size = 0x2000, scoped, tag = 'input window, operand 0, single buffered']
    #allocation4 [shape = 's32[1]{0}', space=sflag, size = 0x4, scoped, tag = 'scoped memory for tpu_custom_call.1']
    #allocation5 [shape = 's32[1]{0}', space=sflag, size = 0x4, scoped, tag = 'scoped memory for tpu_custom_call.1']
    #allocation6 [shape = 'u8[8192]{0}', space=vmem, size = 0x2000, scoped, tag = 'input window, operand 1, single buffered']
    #allocation7 [shape = 's32[1]{0}', space=sflag, size = 0x4, scoped, tag = 'scoped memory for tpu_custom_call.1']
    #allocation8 [shape = 'u8[8192]{0}', space=vmem, size = 0x2000, scoped, tag = 'input window, operand 2, single buffered']
    #allocation9 [shape = 'u8[4096]{0}', space=vmem, size = 0x1000, scoped, tag = 'input window, operand 4, single buffered']
    #allocation10 [shape = 's32[1]{0}', space=sflag, size = 0x4, scoped, tag = 'scoped memory for tpu_custom_call.1']
    #allocation11 [shape = 'u8[16384]{0}', space=vmem, size = 0x4000, scoped, tag = 'input window, operand 5, single buffered']
    #allocation12 [shape = 'u8[16384]{0}', space=vmem, size = 0x4000, scoped, tag = 'input window, operand 7, single buffered']
    #allocation13 [shape = 's32[1]{0}', space=sflag, size = 0x4, scoped, tag = 'scoped memory for tpu_custom_call.1']
    #allocation14 [shape = 'u8[16384]{0}', space=vmem, size = 0x4000, scoped, tag = 'input window, operand 9, single buffered']
    #allocation15 [shape = 'u8[16384]{0}', space=vmem, size = 0x4000, scoped, tag = 'input window, operand 11, single buffered']
    #allocation16 [shape = 's32[1]{0}', space=sflag, size = 0x4, scoped, tag = 'scoped memory for tpu_custom_call.1']
    #allocation17 [shape = 'u8[8192]{0}', space=vmem, size = 0x2000, scoped, tag = 'output window, operand 0, single buffered']
    %18 = vsyncpa [#allocation4], 0
    %19 = vsyncpa [#allocation7], 0
    %20 = vsyncpa [#allocation10], 0
    %21 = vsyncpa [#allocation13], 0
    %22 = vsyncpa [#allocation16], 0
    %23 = vsyncpa [#allocation5], 0
    // Predicated region
    $region2: #{tpu_custom_call.1} parent=1 // pred_check
      _
    $region3: #{tpu_custom_call.1} parent=1 // pred_check_branch
      %25 = sbr.rel (0) target = $region5
    $region4: #{tpu_custom_call.1} parent=1 // pred_region
      %27 = vsyncadd [#allocation4], 0
      %s28 = sshll.u32 %s0, 4
      %s29 = int_to_ptr.hbm [resolvable:$true] %s28
      %s30 = sshll.u32 [#allocation3], 4
      %s31 = int_to_ptr.vmem [resolvable:$true] %s30
      %36 = dma.hbm_to_vmem [thread:$0]  %s29, 256, %s31, [#allocation4], 128, 128, 8
    $region5: #{tpu_custom_call.1} parent=1 // pred_fallthru
      _
    // Predicated region
    $region6: #{tpu_custom_call.1} parent=1 // pred_check
      _
    $region7: #{tpu_custom_call.1} parent=1 // pred_check_branch
      %38 = sbr.rel (0) target = $region9
    $region8: #{tpu_custom_call.1} parent=1 // pred_region
      %40 = vsyncadd [#allocation7], 0
      %s41 = sshll.u32 %s1, 4
      %s42 = int_to_ptr.hbm [resolvable:$true] %s41
      %s43 = sshll.u32 [#allocation6], 4
      %s44 = int_to_ptr.vmem [resolvable:$true] %s43
      %49 = dma.hbm_to_vmem [thread:$0]  %s42, 256, %s44, [#allocation7], 128, 128, 8
    $region9: #{tpu_custom_call.1} parent=1 // pred_fallthru
      _
    // Predicated region
    $region10: #{tpu_custom_call.1} parent=1 // pred_check
      _
    $region11: #{tpu_custom_call.1} parent=1 // pred_check_branch
      %51 = sbr.rel (0) target = $region13
    $region12: #{tpu_custom_call.1} parent=1 // pred_region
      %53 = vsyncadd [#allocation7], 0
      %s54 = sshll.u32 %s2, 4
      %s55 = int_to_ptr.hbm [resolvable:$true] %s54
      %s56 = sshll.u32 [#allocation8], 4
      %s57 = int_to_ptr.vmem [resolvable:$true] %s56
      %62 = dma.hbm_to_vmem [thread:$0]  %s55, 256, %s57, [#allocation7], 128, 128, 8
    $region13: #{tpu_custom_call.1} parent=1 // pred_fallthru
      _
    // Predicated region
    $region14: #{tpu_custom_call.1} parent=1 // pred_check
      _
    $region15: #{tpu_custom_call.1} parent=1 // pred_check_branch
      %64 = sbr.rel (0) target = $region17
    $region16: #{tpu_custom_call.1} parent=1 // pred_region
      _
    $region17: #{tpu_custom_call.1} parent=1 // pred_fallthru
      _
    // Predicated region
    $region18: #{tpu_custom_call.1} parent=1 // pred_check
      _
    $region19: #{tpu_custom_call.1} parent=1 // pred_check_branch
      %66 = sbr.rel (0) target = $region21
    $region20: #{tpu_custom_call.1} parent=1 // pred_region
      %68 = vsyncadd [#allocation10], 0
      %s70 = sshll.u32 %s4, 4
      %s71 = int_to_ptr.hbm [resolvable:$true] %s70
      %s72 = sshll.u32 [#allocation9], 4
      %s73 = int_to_ptr.vmem [resolvable:$true] %s72
      %75 = dma.hbm_to_vmem [thread:$0]  %s71, 128, %s73, [#allocation10]
    $region21: #{tpu_custom_call.1} parent=1 // pred_fallthru
      _
    // Predicated region
    $region22: #{tpu_custom_call.1} parent=1 // pred_check
      _
    $region23: #{tpu_custom_call.1} parent=1 // pred_check_branch
      %77 = sbr.rel (0) target = $region25
    $region24: #{tpu_custom_call.1} parent=1 // pred_region
      %79 = vsyncadd [#allocation10], 0
      %s80 = sshll.u32 %s5, 4
      %s81 = int_to_ptr.hbm [resolvable:$true] %s80
      %s82 = sshll.u32 [#allocation11], 4
      %s83 = int_to_ptr.vmem [resolvable:$true] %s82
      %88 = dma.hbm_to_vmem [thread:$0]  %s81, 512, %s83, [#allocation10], 128, 128, 8
    $region25: #{tpu_custom_call.1} parent=1 // pred_fallthru
      _
    // Predicated region
    $region26: #{tpu_custom_call.1} parent=1 // pred_check
      _
    $region27: #{tpu_custom_call.1} parent=1 // pred_check_branch
      %90 = sbr.rel (0) target = $region29
    $region28: #{tpu_custom_call.1} parent=1 // pred_region
      _
    $region29: #{tpu_custom_call.1} parent=1 // pred_fallthru
      _
    // Predicated region
    $region30: #{tpu_custom_call.1} parent=1 // pred_check
      _
    $region31: #{tpu_custom_call.1} parent=1 // pred_check_branch
      %92 = sbr.rel (0) target = $region33
    $region32: #{tpu_custom_call.1} parent=1 // pred_region
      %94 = vsyncadd [#allocation13], 0
      %s95 = sshll.u32 %s7, 4
      %s96 = int_to_ptr.hbm [resolvable:$true] %s95
      %s97 = sshll.u32 [#allocation12], 4
      %s98 = int_to_ptr.vmem [resolvable:$true] %s97
      %103 = dma.hbm_to_vmem [thread:$0]  %s96, 512, %s98, [#allocation13], 128, 128, 8
    $region33: #{tpu_custom_call.1} parent=1 // pred_fallthru
      _
    // Predicated region
    $region34: #{tpu_custom_call.1} parent=1 // pred_check
      _
    $region35: #{tpu_custom_call.1} parent=1 // pred_check_branch
      %105 = sbr.rel (0) target = $region37
    $region36: #{tpu_custom_call.1} parent=1 // pred_region
      _
    $region37: #{tpu_custom_call.1} parent=1 // pred_fallthru
      _
    // Predicated region
    $region38: #{tpu_custom_call.1} parent=1 // pred_check
      _
    $region39: #{tpu_custom_call.1} parent=1 // pred_check_branch
      %107 = sbr.rel (0) target = $region41
    $region40: #{tpu_custom_call.1} parent=1 // pred_region
      %109 = vsyncadd [#allocation13], 0
      %s110 = sshll.u32 %s9, 4
      %s111 = int_to_ptr.hbm [resolvable:$true] %s110
      %s112 = sshll.u32 [#allocation14], 4
      %s113 = int_to_ptr.vmem [resolvable:$true] %s112
      %118 = dma.hbm_to_vmem [thread:$0]  %s111, 512, %s113, [#allocation13], 128, 128, 8
    $region41: #{tpu_custom_call.1} parent=1 // pred_fallthru
      _
    // Predicated region
    $region42: #{tpu_custom_call.1} parent=1 // pred_check
      _
    $region43: #{tpu_custom_call.1} parent=1 // pred_check_branch
      %120 = sbr.rel (0) target = $region45
    $region44: #{tpu_custom_call.1} parent=1 // pred_region
      _
    $region45: #{tpu_custom_call.1} parent=1 // pred_fallthru
      _
    // Predicated region
    $region46: #{tpu_custom_call.1} parent=1 // pred_check
      _
    $region47: #{tpu_custom_call.1} parent=1 // pred_check_branch
      %122 = sbr.rel (0) target = $region49
    $region48: #{tpu_custom_call.1} parent=1 // pred_region
      %124 = vsyncadd [#allocation16], 0
      %s125 = sshll.u32 %s11, 4
      %s126 = int_to_ptr.hbm [resolvable:$true] %s125
      %s127 = sshll.u32 [#allocation15], 4
      %s128 = int_to_ptr.vmem [resolvable:$true] %s127
      %133 = dma.hbm_to_vmem [thread:$0]  %s126, 512, %s128, [#allocation16], 128, 128, 8
    $region49: #{tpu_custom_call.1} parent=1 // pred_fallthru
      _
    // Predicated region
    $region50: #{tpu_custom_call.1} parent=1 // pred_check
      _
    $region51: #{tpu_custom_call.1} parent=1 // pred_check_branch
      %135 = sbr.rel (0) target = $region53
    $region52: #{tpu_custom_call.1} parent=1 // pred_region
      _
    $region53: #{tpu_custom_call.1} parent=1 // pred_fallthru
      _
    // Predicated region
    $region54: #{tpu_custom_call.1} parent=1 // pred_check
      _
    $region55: #{tpu_custom_call.1} parent=1 // pred_check_branch
      %137 = sbr.rel (0) target = $region57
    $region56: #{tpu_custom_call.1} parent=1 // pred_region
      %139 = dma.done [#allocation4], 256
    $region57: #{tpu_custom_call.1} parent=1 // pred_fallthru
      _
    // Predicated region
    $region58: #{tpu_custom_call.1} parent=1 // pred_check
      _
    $region59: #{tpu_custom_call.1} parent=1 // pred_check_branch
      %141 = sbr.rel (0) target = $region61
    $region60: #{tpu_custom_call.1} parent=1 // pred_region
      %143 = dma.done [#allocation7], 256
    $region61: #{tpu_custom_call.1} parent=1 // pred_fallthru
      _
    // Predicated region
    $region62: #{tpu_custom_call.1} parent=1 // pred_check
      _
    $region63: #{tpu_custom_call.1} parent=1 // pred_check_branch
      %145 = sbr.rel (0) target = $region65
    $region64: #{tpu_custom_call.1} parent=1 // pred_region
      %147 = dma.done [#allocation7], 256
    $region65: #{tpu_custom_call.1} parent=1 // pred_fallthru
      _
    // Predicated region
    $region66: #{tpu_custom_call.1} parent=1 // pred_check
      _
    $region67: #{tpu_custom_call.1} parent=1 // pred_check_branch
      %149 = sbr.rel (0) target = $region69
    $region68: #{tpu_custom_call.1} parent=1 // pred_region
      %151 = dma.done [#allocation10], 128
    $region69: #{tpu_custom_call.1} parent=1 // pred_fallthru
      _
    // Predicated region
    $region70: #{tpu_custom_call.1} parent=1 // pred_check
      _
    $region71: #{tpu_custom_call.1} parent=1 // pred_check_branch
      %153 = sbr.rel (0) target = $region73
    $region72: #{tpu_custom_call.1} parent=1 // pred_region
      %155 = dma.done [#allocation10], 512
    $region73: #{tpu_custom_call.1} parent=1 // pred_fallthru
      _
    // Predicated region
    $region74: #{tpu_custom_call.1} parent=1 // pred_check
      _
    $region75: #{tpu_custom_call.1} parent=1 // pred_check_branch
      %157 = sbr.rel (0) target = $region77
    $region76: #{tpu_custom_call.1} parent=1 // pred_region
      %159 = dma.done [#allocation13], 512
    $region77: #{tpu_custom_call.1} parent=1 // pred_fallthru
      _
    // Predicated region
    $region78: #{tpu_custom_call.1} parent=1 // pred_check
      _
    $region79: #{tpu_custom_call.1} parent=1 // pred_check_branch
      %161 = sbr.rel (0) target = $region81
    $region80: #{tpu_custom_call.1} parent=1 // pred_region
      %163 = dma.done [#allocation13], 512
    $region81: #{tpu_custom_call.1} parent=1 // pred_fallthru
      _
    // Predicated region
    $region82: #{tpu_custom_call.1} parent=1 // pred_check
      _
    $region83: #{tpu_custom_call.1} parent=1 // pred_check_branch
      %165 = sbr.rel (0) target = $region85
    $region84: #{tpu_custom_call.1} parent=1 // pred_region
      %167 = dma.done [#allocation16], 512
    $region85: #{tpu_custom_call.1} parent=1 // pred_fallthru
      _
    %v168 = vld [vmem:[#allocation3] sm:$0xff]
    %v169 = vld [vmem:[#allocation3 + $0x8] sm:$0xff]
    %v170 = vld [vmem:[#allocation6] sm:$0xff]
    %v171 = vld [vmem:[#allocation6 + $0x8] sm:$0xff]
    %v172 = vld [vmem:[#allocation8] sm:$0xff]
    %v173 = vld [vmem:[#allocation8 + $0x8] sm:$0xff]
    %v174 = vld [vmem:[#allocation9] sm:$0xff]
    %v175 = vld [vmem:[#allocation11] sm:$0xff]
    %v176 = vld [vmem:[#allocation11 + $0x8] sm:$0xff]
    %v177 = vld [vmem:[#allocation11 + $0x10] sm:$0xff]
    %v178 = vld [vmem:[#allocation11 + $0x18] sm:$0xff]
    %v179 = vld [vmem:[%s6] sm:$0x1]
    %v181 = vperm.slane %v179, 0
    %vm183 = vcmask 261120
    %v185 = vsel %vm183, %v168, 0
    %v188 = vsel %vm183, %v169, 0
    %v191 = vsel %vm183, %v175, 0
    %v194 = vsel %vm183, %v176, 0
    %v197 = vsel %vm183, %v177, 0
    %v200 = vsel %vm183, %v178, 0
    %202 = vmatpush.xpose.msra.mxu0 0.0
    %203 = vmatpush.xpose.msra.mxu0 0.0
    %204 = vmatpush.xpose.msra.mxu0 0.0
    %205 = vmatpush.xpose.msra.mxu0 0.0
    %206 = vmatpush.xpose.msra.mxu0 0.0
    %207 = vmatpush.xpose.msra.mxu0 0.0
    %208 = vmatpush.xpose.msra.mxu0 0.0
    %209 = vmatpush.xpose.msra.mxu0 0.0
    %210 = vmatpush.xpose.msra.mxu0 0.0
    %211 = vmatpush.xpose.msra.mxu0 0.0
    %212 = vmatpush.xpose.msra.mxu0 0.0
    %213 = vmatpush.xpose.msra.mxu0 0.0
    %214 = vmatpush.xpose.msra.mxu0 %v200
    %215 = vmatpush.xpose.msra.mxu0 %v197
    %216 = vmatpush.xpose.msra.mxu0 %v194
    %217 = vmatpush.xpose.msra.mxu0 %v191
    %218 = vmatmul.f32.gmra.mxu0 %v185
    %v219 = vpop.f32.mrf.mxu0
    %v220 = vadd.f32 %v181, %v219
    %221 = vmatmul.f32.gmra.mxu0 %v188
    %v222 = vpop.f32.mrf.mxu0
    %v223 = vadd.f32 %v181, %v222
    %224 = vdwg.mxu0
    %v225 = vld [vmem:[#allocation12] sm:$0xff]
    %v226 = vld [vmem:[#allocation12 + $0x8] sm:$0xff]
    %v227 = vld [vmem:[#allocation12 + $0x10] sm:$0xff]
    %v228 = vld [vmem:[#allocation12 + $0x18] sm:$0xff]
    %v229 = vld [vmem:[%s8] sm:$0x1]
    %v231 = vperm.slane %v229, 0
    %v234 = vsel %vm183, %v170, 0
    %v237 = vsel %vm183, %v171, 0
    %v240 = vsel %vm183, %v225, 0
    %v243 = vsel %vm183, %v226, 0
    %v246 = vsel %vm183, %v227, 0
    %v249 = vsel %vm183, %v228, 0
    %251 = vmatpush.xpose.msra.mxu0 0.0
    %252 = vmatpush.xpose.msra.mxu0 0.0
    %253 = vmatpush.xpose.msra.mxu0 0.0
    %254 = vmatpush.xpose.msra.mxu0 0.0
    %255 = vmatpush.xpose.msra.mxu0 0.0
    %256 = vmatpush.xpose.msra.mxu0 0.0
    %257 = vmatpush.xpose.msra.mxu0 0.0
    %258 = vmatpush.xpose.msra.mxu0 0.0
    %259 = vmatpush.xpose.msra.mxu0 0.0
    %260 = vmatpush.xpose.msra.mxu0 0.0
    %261 = vmatpush.xpose.msra.mxu0 0.0
    %262 = vmatpush.xpose.msra.mxu0 0.0
    %263 = vmatpush.xpose.msra.mxu0 %v249
    %264 = vmatpush.xpose.msra.mxu0 %v246
    %265 = vmatpush.xpose.msra.mxu0 %v243
    %266 = vmatpush.xpose.msra.mxu0 %v240
    %267 = vmatmul.f32.gmra.mxu0 %v234
    %v268 = vpop.f32.mrf.mxu0
    %v269 = vadd.f32 %v231, %v268
    %270 = vmatmul.f32.gmra.mxu0 %v237
    %v271 = vpop.f32.mrf.mxu0
    %v272 = vadd.f32 %v231, %v271
    %273 = vdwg.mxu0
    %v274 = vld [vmem:[#allocation14] sm:$0xff]
    %v275 = vld [vmem:[#allocation14 + $0x8] sm:$0xff]
    %v276 = vld [vmem:[#allocation14 + $0x10] sm:$0xff]
    %v277 = vld [vmem:[#allocation14 + $0x18] sm:$0xff]
    %v278 = vld [vmem:[%s10] sm:$0x1]
    %v280 = vperm.slane %v278, 0
    %v283 = vsel %vm183, %v172, 0
    %v286 = vsel %vm183, %v173, 0
    %v289 = vsel %vm183, %v274, 0
    %v292 = vsel %vm183, %v275, 0
    %v295 = vsel %vm183, %v276, 0
    %v298 = vsel %vm183, %v277, 0
    %300 = vmatpush.xpose.msra.mxu0 0.0
    %301 = vmatpush.xpose.msra.mxu0 0.0
    %302 = vmatpush.xpose.msra.mxu0 0.0
    %303 = vmatpush.xpose.msra.mxu0 0.0
    %304 = vmatpush.xpose.msra.mxu0 0.0
    %305 = vmatpush.xpose.msra.mxu0 0.0
    %306 = vmatpush.xpose.msra.mxu0 0.0
    %307 = vmatpush.xpose.msra.mxu0 0.0
    %308 = vmatpush.xpose.msra.mxu0 0.0
    %309 = vmatpush.xpose.msra.mxu0 0.0
    %310 = vmatpush.xpose.msra.mxu0 0.0
    %311 = vmatpush.xpose.msra.mxu0 0.0
    %312 = vmatpush.xpose.msra.mxu0 %v298
    %313 = vmatpush.xpose.msra.mxu0 %v295
    %314 = vmatpush.xpose.msra.mxu0 %v292
    %315 = vmatpush.xpose.msra.mxu0 %v289
    %316 = vmatmul.f32.gmra.mxu0 %v283
    %v317 = vpop.f32.mrf.mxu0
    %v318 = vadd.f32 %v280, %v317
    %319 = vmatmul.f32.gmra.mxu0 %v286
    %v320 = vpop.f32.mrf.mxu0
    %v321 = vadd.f32 %v280, %v320
    %322 = vdwg.mxu0
    %v323 = vld [vmem:[%s3] sm:$0x1]
    %v325 = vperm.slane %v323, 0
    %vm327 = vcmask 64512
    %v329 = vsel %vm327, %v220, 0
    %v332 = vsel %vm327, %v269, 0
    %334 = vmatpush.xpose.msra.mxu0 0.0
    %335 = vmatpush.xpose.msra.mxu0 0.0
    %336 = vmatpush.xpose.msra.mxu0 0.0
    %337 = vmatpush.xpose.msra.mxu0 0.0
    %338 = vmatpush.xpose.msra.mxu0 0.0
    %339 = vmatpush.xpose.msra.mxu0 0.0
    %340 = vmatpush.xpose.msra.mxu0 0.0
    %341 = vmatpush.xpose.msra.mxu0 0.0
    %342 = vmatpush.xpose.msra.mxu0 0.0
    %343 = vmatpush.xpose.msra.mxu0 0.0
    %344 = vmatpush.xpose.msra.mxu0 0.0
    %345 = vmatpush.xpose.msra.mxu0 0.0
    %346 = vmatpush.xpose.msra.mxu0 0.0
    %347 = vmatpush.xpose.msra.mxu0 0.0
    %348 = vmatpush.xpose.msra.mxu0 0.0
    %349 = vmatpush.xpose.msra.mxu0 %v332
    %350 = vmatmul.f32.gmra.mxu0 %v329
    %v351 = vpop.f32.mrf.mxu0
    %v352 = vadd.f32 %v325, %v351
    %353 = vdwg.mxu0
    %v354 = vsel %vm327, %v352, -inf
    %355 = vmax.xlane.f32.xlu0 %v354
    %v356 = vpop.xlane.xlu0 %355
    %v357 = vsub.f32 %v352, %v356
    %v358 = vmul.f32 %v357, 1.442695
    %v359 = vpow.pop %v358
    %v360 = vsel %vm327, %v359, 0.0
    %361 = vadd.xlane.f32.xlu0 %v360
    %v362 = vpop.xlane.xlu0 %361
    %v363 = vrcp.pop %v362
    %v364 = vmul.f32 %v362, %v363
    %v365 = vsub.f32 1.0, %v364
    %v366 = vmul.f32 %v363, %v365
    %v367 = vadd.f32 %v363, %v366
    %vm368 = vweird.f32 %v362
    %vm369 = vweird.f32 %v363
    %vm370 = vmor %vm368, %vm369
    %v371 = vsel %vm370, %v363, %v367
    %v372 = vand.u32 2147483647, %v362
    %vm373 = vcmp.eq.f32.partialorder %v372, 8.507059e+37
    %v374 = vand.u32 %v362, 2147483648
    %v375 = vor.u32 1.1754944e-38, %v374
    %v376 = vsel %vm373, %v375, %v371
    %v377 = vmul.f32 %v359, %v376
    %v378 = vmul.f32 %v377, %v174
    %v380 = vsel %vm327, %v378, 0
    %382 = vmatpush.msra.mxu0 0.0
    %383 = vmatpush.msra.mxu0 0.0
    %384 = vmatpush.msra.mxu0 0.0
    %385 = vmatpush.msra.mxu0 0.0
    %386 = vmatpush.msra.mxu0 0.0
    %387 = vmatpush.msra.mxu0 0.0
    %388 = vmatpush.msra.mxu0 0.0
    %389 = vmatpush.msra.mxu0 0.0
    %390 = vmatpush.msra.mxu0 0.0
    %391 = vmatpush.msra.mxu0 0.0
    %392 = vmatpush.msra.mxu0 0.0
    %393 = vmatpush.msra.mxu0 0.0
    %394 = vmatpush.msra.mxu0 0.0
    %395 = vmatpush.msra.mxu0 0.0
    %396 = vmatpush.msra.mxu0 0.0
    %397 = vmatpush.msra.mxu0 %v318
    %398 = vmatmul.f32.gmra.mxu0 %v380
    %v399 = vpop.f32.mrf.mxu0
    %v400 = vadd.f32 0.0, %v399
    %401 = vdwg.mxu0
    %402 = vst.msk [vmem:[#allocation2] sm:$0xff] %vm327, %v400
    %403 = vrot.lane.b32.xlu0 %v220, 120
    %v404 = vpop.permute.xlu0 %403
    %405 = vrot.lane.b32.xlu0 %v269, 120
    %v406 = vpop.permute.xlu0 %405
    %v407 = vsel %vm327, %v404, 0
    %v409 = vsel %vm327, %v406, 0
    %411 = vmatpush.xpose.msra.mxu0 0.0
    %412 = vmatpush.xpose.msra.mxu0 0.0
    %413 = vmatpush.xpose.msra.mxu0 0.0
    %414 = vmatpush.xpose.msra.mxu0 0.0
    %415 = vmatpush.xpose.msra.mxu0 0.0
    %416 = vmatpush.xpose.msra.mxu0 0.0
    %417 = vmatpush.xpose.msra.mxu0 0.0
    %418 = vmatpush.xpose.msra.mxu0 0.0
    %419 = vmatpush.xpose.msra.mxu0 0.0
    %420 = vmatpush.xpose.msra.mxu0 0.0
    %421 = vmatpush.xpose.msra.mxu0 0.0
    %422 = vmatpush.xpose.msra.mxu0 0.0
    %423 = vmatpush.xpose.msra.mxu0 0.0
    %424 = vmatpush.xpose.msra.mxu0 0.0
    %425 = vmatpush.xpose.msra.mxu0 0.0
    %426 = vmatpush.xpose.msra.mxu0 %v409
    %427 = vmatmul.f32.gmra.mxu0 %v407
    %v428 = vpop.f32.mrf.mxu0
    %v429 = vadd.f32 %v325, %v428
    %430 = vdwg.mxu0
    %v431 = vsel %vm327, %v429, -inf
    %432 = vmax.xlane.f32.xlu0 %v431
    %v433 = vpop.xlane.xlu0 %432
    %v434 = vsub.f32 %v429, %v433
    %v435 = vmul.f32 %v434, 1.442695
    %v436 = vpow.pop %v435
    %v437 = vsel %vm327, %v436, 0.0
    %438 = vadd.xlane.f32.xlu0 %v437
    %v439 = vpop.xlane.xlu0 %438
    %v440 = vrcp.pop %v439
    %v441 = vmul.f32 %v439, %v440
    %v442 = vsub.f32 1.0, %v441
    %v443 = vmul.f32 %v440, %v442
    %v444 = vadd.f32 %v440, %v443
    %vm445 = vweird.f32 %v439
    %vm446 = vweird.f32 %v440
    %vm447 = vmor %vm445, %vm446
    %v448 = vsel %vm447, %v440, %v444
    %v449 = vand.u32 2147483647, %v439
    %vm450 = vcmp.eq.f32.partialorder %v449, 8.507059e+37
    %v451 = vand.u32 %v439, 2147483648
    %v452 = vor.u32 1.1754944e-38, %v451
    %v453 = vsel %vm450, %v452, %v448
    %v454 = vmul.f32 %v436, %v453
    %v455 = vmul.f32 %v454, %v174
    %457 = vrot.lane.b32.xlu0 %v318, 120
    %v458 = vpop.permute.xlu0 %457
    %v461 = vsel %vm327, %v455, 0
    %463 = vmatpush.msra.mxu0 0.0
    %464 = vmatpush.msra.mxu0 0.0
    %465 = vmatpush.msra.mxu0 0.0
    %466 = vmatpush.msra.mxu0 0.0
    %467 = vmatpush.msra.mxu0 0.0
    %468 = vmatpush.msra.mxu0 0.0
    %469 = vmatpush.msra.mxu0 0.0
    %470 = vmatpush.msra.mxu0 0.0
    %471 = vmatpush.msra.mxu0 0.0
    %472 = vmatpush.msra.mxu0 0.0
    %473 = vmatpush.msra.mxu0 0.0
    %474 = vmatpush.msra.mxu0 0.0
    %475 = vmatpush.msra.mxu0 0.0
    %476 = vmatpush.msra.mxu0 0.0
    %477 = vmatpush.msra.mxu0 0.0
    %478 = vmatpush.msra.mxu0 %v458
    %479 = vmatmul.f32.gmra.mxu0 %v461
    %v480 = vpop.f32.mrf.mxu0
    %v481 = vadd.f32 0.0, %v480
    %482 = vdwg.mxu0
    %484 = vrot.lane.b32.xlu0 %v481, 8
    %v485 = vpop.permute.xlu0 %484
    %vm487 = vcmask 130112
    %488 = vst.msk [vmem:[#allocation2] sm:$0xff] %vm487, %v485
    %489 = vrot.lane.b32.xlu0 %v220, 112
    %v490 = vpop.permute.xlu0 %489
    %491 = vrot.lane.b32.xlu0 %v269, 112
    %v492 = vpop.permute.xlu0 %491
    %v493 = vsel %vm327, %v490, 0
    %v495 = vsel %vm327, %v492, 0
    %497 = vmatpush.xpose.msra.mxu0 0.0
    %498 = vmatpush.xpose.msra.mxu0 0.0
    %499 = vmatpush.xpose.msra.mxu0 0.0
    %500 = vmatpush.xpose.msra.mxu0 0.0
    %501 = vmatpush.xpose.msra.mxu0 0.0
    %502 = vmatpush.xpose.msra.mxu0 0.0
    %503 = vmatpush.xpose.msra.mxu0 0.0
    %504 = vmatpush.xpose.msra.mxu0 0.0
    %505 = vmatpush.xpose.msra.mxu0 0.0
    %506 = vmatpush.xpose.msra.mxu0 0.0
    %507 = vmatpush.xpose.msra.mxu0 0.0
    %508 = vmatpush.xpose.msra.mxu0 0.0
    %509 = vmatpush.xpose.msra.mxu0 0.0
    %510 = vmatpush.xpose.msra.mxu0 0.0
    %511 = vmatpush.xpose.msra.mxu0 0.0
    %512 = vmatpush.xpose.msra.mxu0 %v495
    %513 = vmatmul.f32.gmra.mxu0 %v493
    %v514 = vpop.f32.mrf.mxu0
    %v515 = vadd.f32 %v325, %v514
    %516 = vdwg.mxu0
    %v517 = vsel %vm327, %v515, -inf
    %518 = vmax.xlane.f32.xlu0 %v517
    %v519 = vpop.xlane.xlu0 %518
    %v520 = vsub.f32 %v515, %v519
    %v521 = vmul.f32 %v520, 1.442695
    %v522 = vpow.pop %v521
    %v523 = vsel %vm327, %v522, 0.0
    %524 = vadd.xlane.f32.xlu0 %v523
    %v525 = vpop.xlane.xlu0 %524
    %v526 = vrcp.pop %v525
    %v527 = vmul.f32 %v525, %v526
    %v528 = vsub.f32 1.0, %v527
    %v529 = vmul.f32 %v526, %v528
    %v530 = vadd.f32 %v526, %v529
    %vm531 = vweird.f32 %v525
    %vm532 = vweird.f32 %v526
    %vm533 = vmor %vm531, %vm532
    %v534 = vsel %vm533, %v526, %v530
    %v535 = vand.u32 2147483647, %v525
    %vm536 = vcmp.eq.f32.partialorder %v535, 8.507059e+37
    %v537 = vand.u32 %v525, 2147483648
    %v538 = vor.u32 1.1754944e-38, %v537
    %v539 = vsel %vm536, %v538, %v534
    %v540 = vmul.f32 %v522, %v539
    %v541 = vmul.f32 %v540, %v174
    %542 = vrot.lane.b32.xlu0 %v318, 112
    %v543 = vpop.permute.xlu0 %542
    %v546 = vsel %vm327, %v541, 0
    %548 = vmatpush.msra.mxu0 0.0
    %549 = vmatpush.msra.mxu0 0.0
    %550 = vmatpush.msra.mxu0 0.0
    %551 = vmatpush.msra.mxu0 0.0
    %552 = vmatpush.msra.mxu0 0.0
    %553 = vmatpush.msra.mxu0 0.0
    %554 = vmatpush.msra.mxu0 0.0
    %555 = vmatpush.msra.mxu0 0.0
    %556 = vmatpush.msra.mxu0 0.0
    %557 = vmatpush.msra.mxu0 0.0
    %558 = vmatpush.msra.mxu0 0.0
    %559 = vmatpush.msra.mxu0 0.0
    %560 = vmatpush.msra.mxu0 0.0
    %561 = vmatpush.msra.mxu0 0.0
    %562 = vmatpush.msra.mxu0 0.0
    %563 = vmatpush.msra.mxu0 %v543
    %564 = vmatmul.f32.gmra.mxu0 %v546
    %v565 = vpop.f32.mrf.mxu0
    %v566 = vadd.f32 0.0, %v565
    %567 = vdwg.mxu0
    %569 = vrot.lane.b32.xlu0 %v566, 16
    %v570 = vpop.permute.xlu0 %569
    %vm572 = vcmask 195712
    %573 = vst.msk [vmem:[#allocation2] sm:$0xff] %vm572, %v570
    %574 = vrot.lane.b32.xlu0 %v220, 104
    %v575 = vpop.permute.xlu0 %574
    %576 = vrot.lane.b32.xlu0 %v269, 104
    %v577 = vpop.permute.xlu0 %576
    %v578 = vsel %vm327, %v575, 0
    %v580 = vsel %vm327, %v577, 0
    %582 = vmatpush.xpose.msra.mxu0 0.0
    %583 = vmatpush.xpose.msra.mxu0 0.0
    %584 = vmatpush.xpose.msra.mxu0 0.0
    %585 = vmatpush.xpose.msra.mxu0 0.0
    %586 = vmatpush.xpose.msra.mxu0 0.0
    %587 = vmatpush.xpose.msra.mxu0 0.0
    %588 = vmatpush.xpose.msra.mxu0 0.0
    %589 = vmatpush.xpose.msra.mxu0 0.0
    %590 = vmatpush.xpose.msra.mxu0 0.0
    %591 = vmatpush.xpose.msra.mxu0 0.0
    %592 = vmatpush.xpose.msra.mxu0 0.0
    %593 = vmatpush.xpose.msra.mxu0 0.0
    %594 = vmatpush.xpose.msra.mxu0 0.0
    %595 = vmatpush.xpose.msra.mxu0 0.0
    %596 = vmatpush.xpose.msra.mxu0 0.0
    %597 = vmatpush.xpose.msra.mxu0 %v580
    %598 = vmatmul.f32.gmra.mxu0 %v578
    %v599 = vpop.f32.mrf.mxu0
    %v600 = vadd.f32 %v325, %v599
    %601 = vdwg.mxu0
    %v602 = vsel %vm327, %v600, -inf
    %603 = vmax.xlane.f32.xlu0 %v602
    %v604 = vpop.xlane.xlu0 %603
    %v605 = vsub.f32 %v600, %v604
    %v606 = vmul.f32 %v605, 1.442695
    %v607 = vpow.pop %v606
    %v608 = vsel %vm327, %v607, 0.0
    %609 = vadd.xlane.f32.xlu0 %v608
    %v610 = vpop.xlane.xlu0 %609
    %v611 = vrcp.pop %v610
    %v612 = vmul.f32 %v610, %v611
    %v613 = vsub.f32 1.0, %v612
    %v614 = vmul.f32 %v611, %v613
    %v615 = vadd.f32 %v611, %v614
    %vm616 = vweird.f32 %v610
    %vm617 = vweird.f32 %v611
    %vm618 = vmor %vm616, %vm617
    %v619 = vsel %vm618, %v611, %v615
    %v620 = vand.u32 2147483647, %v610
    %vm621 = vcmp.eq.f32.partialorder %v620, 8.507059e+37
    %v622 = vand.u32 %v610, 2147483648
    %v623 = vor.u32 1.1754944e-38, %v622
    %v624 = vsel %vm621, %v623, %v619
    %v625 = vmul.f32 %v607, %v624
    %v626 = vmul.f32 %v625, %v174
    %627 = vrot.lane.b32.xlu0 %v318, 104
    %v628 = vpop.permute.xlu0 %627
    %v631 = vsel %vm327, %v626, 0
    %633 = vmatpush.msra.mxu0 0.0
    %634 = vmatpush.msra.mxu0 0.0
    %635 = vmatpush.msra.mxu0 0.0
    %636 = vmatpush.msra.mxu0 0.0
    %637 = vmatpush.msra.mxu0 0.0
    %638 = vmatpush.msra.mxu0 0.0
    %639 = vmatpush.msra.mxu0 0.0
    %640 = vmatpush.msra.mxu0 0.0
    %641 = vmatpush.msra.mxu0 0.0
    %642 = vmatpush.msra.mxu0 0.0
    %643 = vmatpush.msra.mxu0 0.0
    %644 = vmatpush.msra.mxu0 0.0
    %645 = vmatpush.msra.mxu0 0.0
    %646 = vmatpush.msra.mxu0 0.0
    %647 = vmatpush.msra.mxu0 0.0
    %648 = vmatpush.msra.mxu0 %v628
    %649 = vmatmul.f32.gmra.mxu0 %v631
    %v650 = vpop.f32.mrf.mxu0
    %v651 = vadd.f32 0.0, %v650
    %652 = vdwg.mxu0
    %654 = vrot.lane.b32.xlu0 %v651, 24
    %v655 = vpop.permute.xlu0 %654
    %vm657 = vcmask 261312
    %658 = vst.msk [vmem:[#allocation2] sm:$0xff] %vm657, %v655
    %s659 = scalar_lea.vmem %s3, 1
    %v660 = vld [vmem:[%s659] sm:$0x1]
    %v662 = vperm.slane %v660, 0
    %v665 = vsel %vm327, %v223, 0
    %v668 = vsel %vm327, %v272, 0
    %670 = vmatpush.xpose.msra.mxu0 0.0
    %671 = vmatpush.xpose.msra.mxu0 0.0
    %672 = vmatpush.xpose.msra.mxu0 0.0
    %673 = vmatpush.xpose.msra.mxu0 0.0
    %674 = vmatpush.xpose.msra.mxu0 0.0
    %675 = vmatpush.xpose.msra.mxu0 0.0
    %676 = vmatpush.xpose.msra.mxu0 0.0
    %677 = vmatpush.xpose.msra.mxu0 0.0
    %678 = vmatpush.xpose.msra.mxu0 0.0
    %679 = vmatpush.xpose.msra.mxu0 0.0
    %680 = vmatpush.xpose.msra.mxu0 0.0
    %681 = vmatpush.xpose.msra.mxu0 0.0
    %682 = vmatpush.xpose.msra.mxu0 0.0
    %683 = vmatpush.xpose.msra.mxu0 0.0
    %684 = vmatpush.xpose.msra.mxu0 0.0
    %685 = vmatpush.xpose.msra.mxu0 %v668
    %686 = vmatmul.f32.gmra.mxu0 %v665
    %v687 = vpop.f32.mrf.mxu0
    %v688 = vadd.f32 %v662, %v687
    %689 = vdwg.mxu0
    %v690 = vsel %vm327, %v688, -inf
    %691 = vmax.xlane.f32.xlu0 %v690
    %v692 = vpop.xlane.xlu0 %691
    %v693 = vsub.f32 %v688, %v692
    %v694 = vmul.f32 %v693, 1.442695
    %v695 = vpow.pop %v694
    %v696 = vsel %vm327, %v695, 0.0
    %697 = vadd.xlane.f32.xlu0 %v696
    %v698 = vpop.xlane.xlu0 %697
    %v699 = vrcp.pop %v698
    %v700 = vmul.f32 %v698, %v699
    %v701 = vsub.f32 1.0, %v700
    %v702 = vmul.f32 %v699, %v701
    %v703 = vadd.f32 %v699, %v702
    %vm704 = vweird.f32 %v698
    %vm705 = vweird.f32 %v699
    %vm706 = vmor %vm704, %vm705
    %v707 = vsel %vm706, %v699, %v703
    %v708 = vand.u32 2147483647, %v698
    %vm709 = vcmp.eq.f32.partialorder %v708, 8.507059e+37
    %v710 = vand.u32 %v698, 2147483648
    %v711 = vor.u32 1.1754944e-38, %v710
    %v712 = vsel %vm709, %v711, %v707
    %v713 = vmul.f32 %v695, %v712
    %v714 = vmul.f32 %v713, %v174
    %v716 = vsel %vm327, %v714, 0
    %718 = vmatpush.msra.mxu0 0.0
    %719 = vmatpush.msra.mxu0 0.0
    %720 = vmatpush.msra.mxu0 0.0
    %721 = vmatpush.msra.mxu0 0.0
    %722 = vmatpush.msra.mxu0 0.0
    %723 = vmatpush.msra.mxu0 0.0
    %724 = vmatpush.msra.mxu0 0.0
    %725 = vmatpush.msra.mxu0 0.0
    %726 = vmatpush.msra.mxu0 0.0
    %727 = vmatpush.msra.mxu0 0.0
    %728 = vmatpush.msra.mxu0 0.0
    %729 = vmatpush.msra.mxu0 0.0
    %730 = vmatpush.msra.mxu0 0.0
    %731 = vmatpush.msra.mxu0 0.0
    %732 = vmatpush.msra.mxu0 0.0
    %733 = vmatpush.msra.mxu0 %v321
    %734 = vmatmul.f32.gmra.mxu0 %v716
    %v735 = vpop.f32.mrf.mxu0
    %v736 = vadd.f32 0.0, %v735
    %737 = vdwg.mxu0
    %738 = vst.msk [vmem:[#allocation2 + $0x8] sm:$0xff] %vm327, %v736
    %739 = vrot.lane.b32.xlu0 %v223, 120
    %v740 = vpop.permute.xlu0 %739
    %741 = vrot.lane.b32.xlu0 %v272, 120
    %v742 = vpop.permute.xlu0 %741
    %v743 = vsel %vm327, %v740, 0
    %v745 = vsel %vm327, %v742, 0
    %747 = vmatpush.xpose.msra.mxu0 0.0
    %748 = vmatpush.xpose.msra.mxu0 0.0
    %749 = vmatpush.xpose.msra.mxu0 0.0
    %750 = vmatpush.xpose.msra.mxu0 0.0
    %751 = vmatpush.xpose.msra.mxu0 0.0
    %752 = vmatpush.xpose.msra.mxu0 0.0
    %753 = vmatpush.xpose.msra.mxu0 0.0
    %754 = vmatpush.xpose.msra.mxu0 0.0
    %755 = vmatpush.xpose.msra.mxu0 0.0
    %756 = vmatpush.xpose.msra.mxu0 0.0
    %757 = vmatpush.xpose.msra.mxu0 0.0
    %758 = vmatpush.xpose.msra.mxu0 0.0
    %759 = vmatpush.xpose.msra.mxu0 0.0
    %760 = vmatpush.xpose.msra.mxu0 0.0
    %761 = vmatpush.xpose.msra.mxu0 0.0
    %762 = vmatpush.xpose.msra.mxu0 %v745
    %763 = vmatmul.f32.gmra.mxu0 %v743
    %v764 = vpop.f32.mrf.mxu0
    %v765 = vadd.f32 %v662, %v764
    %766 = vdwg.mxu0
    %v767 = vsel %vm327, %v765, -inf
    %768 = vmax.xlane.f32.xlu0 %v767
    %v769 = vpop.xlane.xlu0 %768
    %v770 = vsub.f32 %v765, %v769
    %v771 = vmul.f32 %v770, 1.442695
    %v772 = vpow.pop %v771
    %v773 = vsel %vm327, %v772, 0.0
    %774 = vadd.xlane.f32.xlu0 %v773
    %v775 = vpop.xlane.xlu0 %774
    %v776 = vrcp.pop %v775
    %v777 = vmul.f32 %v775, %v776
    %v778 = vsub.f32 1.0, %v777
    %v779 = vmul.f32 %v776, %v778
    %v780 = vadd.f32 %v776, %v779
    %vm781 = vweird.f32 %v775
    %vm782 = vweird.f32 %v776
    %vm783 = vmor %vm781, %vm782
    %v784 = vsel %vm783, %v776, %v780
    %v785 = vand.u32 2147483647, %v775
    %vm786 = vcmp.eq.f32.partialorder %v785, 8.507059e+37
    %v787 = vand.u32 %v775, 2147483648
    %v788 = vor.u32 1.1754944e-38, %v787
    %v789 = vsel %vm786, %v788, %v784
    %v790 = vmul.f32 %v772, %v789
    %v791 = vmul.f32 %v790, %v174
    %793 = vrot.lane.b32.xlu0 %v321, 120
    %v794 = vpop.permute.xlu0 %793
    %v797 = vsel %vm327, %v791, 0
    %799 = vmatpush.msra.mxu0 0.0
    %800 = vmatpush.msra.mxu0 0.0
    %801 = vmatpush.msra.mxu0 0.0
    %802 = vmatpush.msra.mxu0 0.0
    %803 = vmatpush.msra.mxu0 0.0
    %804 = vmatpush.msra.mxu0 0.0
    %805 = vmatpush.msra.mxu0 0.0
    %806 = vmatpush.msra.mxu0 0.0
    %807 = vmatpush.msra.mxu0 0.0
    %808 = vmatpush.msra.mxu0 0.0
    %809 = vmatpush.msra.mxu0 0.0
    %810 = vmatpush.msra.mxu0 0.0
    %811 = vmatpush.msra.mxu0 0.0
    %812 = vmatpush.msra.mxu0 0.0
    %813 = vmatpush.msra.mxu0 0.0
    %814 = vmatpush.msra.mxu0 %v794
    %815 = vmatmul.f32.gmra.mxu0 %v797
    %v816 = vpop.f32.mrf.mxu0
    %v817 = vadd.f32 0.0, %v816
    %818 = vdwg.mxu0
    %820 = vrot.lane.b32.xlu0 %v817, 8
    %v821 = vpop.permute.xlu0 %820
    %823 = vst.msk [vmem:[#allocation2 + $0x8] sm:$0xff] %vm487, %v821
    %824 = vrot.lane.b32.xlu0 %v223, 112
    %v825 = vpop.permute.xlu0 %824
    %826 = vrot.lane.b32.xlu0 %v272, 112
    %v827 = vpop.permute.xlu0 %826
    %v828 = vsel %vm327, %v825, 0
    %v830 = vsel %vm327, %v827, 0
    %832 = vmatpush.xpose.msra.mxu0 0.0
    %833 = vmatpush.xpose.msra.mxu0 0.0
    %834 = vmatpush.xpose.msra.mxu0 0.0
    %835 = vmatpush.xpose.msra.mxu0 0.0
    %836 = vmatpush.xpose.msra.mxu0 0.0
    %837 = vmatpush.xpose.msra.mxu0 0.0
    %838 = vmatpush.xpose.msra.mxu0 0.0
    %839 = vmatpush.xpose.msra.mxu0 0.0
    %840 = vmatpush.xpose.msra.mxu0 0.0
    %841 = vmatpush.xpose.msra.mxu0 0.0
    %842 = vmatpush.xpose.msra.mxu0 0.0
    %843 = vmatpush.xpose.msra.mxu0 0.0
    %844 = vmatpush.xpose.msra.mxu0 0.0
    %845 = vmatpush.xpose.msra.mxu0 0.0
    %846 = vmatpush.xpose.msra.mxu0 0.0
    %847 = vmatpush.xpose.msra.mxu0 %v830
    %848 = vmatmul.f32.gmra.mxu0 %v828
    %v849 = vpop.f32.mrf.mxu0
    %v850 = vadd.f32 %v662, %v849
    %851 = vdwg.mxu0
    %v852 = vsel %vm327, %v850, -inf
    %853 = vmax.xlane.f32.xlu0 %v852
    %v854 = vpop.xlane.xlu0 %853
    %v855 = vsub.f32 %v850, %v854
    %v856 = vmul.f32 %v855, 1.442695
    %v857 = vpow.pop %v856
    %v858 = vsel %vm327, %v857, 0.0
    %859 = vadd.xlane.f32.xlu0 %v858
    %v860 = vpop.xlane.xlu0 %859
    %v861 = vrcp.pop %v860
    %v862 = vmul.f32 %v860, %v861
    %v863 = vsub.f32 1.0, %v862
    %v864 = vmul.f32 %v861, %v863
    %v865 = vadd.f32 %v861, %v864
    %vm866 = vweird.f32 %v860
    %vm867 = vweird.f32 %v861
    %vm868 = vmor %vm866, %vm867
    %v869 = vsel %vm868, %v861, %v865
    %v870 = vand.u32 2147483647, %v860
    %vm871 = vcmp.eq.f32.partialorder %v870, 8.507059e+37
    %v872 = vand.u32 %v860, 2147483648
    %v873 = vor.u32 1.1754944e-38, %v872
    %v874 = vsel %vm871, %v873, %v869
    %v875 = vmul.f32 %v857, %v874
    %v876 = vmul.f32 %v875, %v174
    %877 = vrot.lane.b32.xlu0 %v321, 112
    %v878 = vpop.permute.xlu0 %877
    %v881 = vsel %vm327, %v876, 0
    %883 = vmatpush.msra.mxu0 0.0
    %884 = vmatpush.msra.mxu0 0.0
    %885 = vmatpush.msra.mxu0 0.0
    %886 = vmatpush.msra.mxu0 0.0
    %887 = vmatpush.msra.mxu0 0.0
    %888 = vmatpush.msra.mxu0 0.0
    %889 = vmatpush.msra.mxu0 0.0
    %890 = vmatpush.msra.mxu0 0.0
    %891 = vmatpush.msra.mxu0 0.0
    %892 = vmatpush.msra.mxu0 0.0
    %893 = vmatpush.msra.mxu0 0.0
    %894 = vmatpush.msra.mxu0 0.0
    %895 = vmatpush.msra.mxu0 0.0
    %896 = vmatpush.msra.mxu0 0.0
    %897 = vmatpush.msra.mxu0 0.0
    %898 = vmatpush.msra.mxu0 %v878
    %899 = vmatmul.f32.gmra.mxu0 %v881
    %v900 = vpop.f32.mrf.mxu0
    %v901 = vadd.f32 0.0, %v900
    %902 = vdwg.mxu0
    %904 = vrot.lane.b32.xlu0 %v901, 16
    %v905 = vpop.permute.xlu0 %904
    %907 = vst.msk [vmem:[#allocation2 + $0x8] sm:$0xff] %vm572, %v905
    %908 = vrot.lane.b32.xlu0 %v223, 104
    %v909 = vpop.permute.xlu0 %908
    %910 = vrot.lane.b32.xlu0 %v272, 104
    %v911 = vpop.permute.xlu0 %910
    %v912 = vsel %vm327, %v909, 0
    %v914 = vsel %vm327, %v911, 0
    %916 = vmatpush.xpose.msra.mxu0 0.0
    %917 = vmatpush.xpose.msra.mxu0 0.0
    %918 = vmatpush.xpose.msra.mxu0 0.0
    %919 = vmatpush.xpose.msra.mxu0 0.0
    %920 = vmatpush.xpose.msra.mxu0 0.0
    %921 = vmatpush.xpose.msra.mxu0 0.0
    %922 = vmatpush.xpose.msra.mxu0 0.0
    %923 = vmatpush.xpose.msra.mxu0 0.0
    %924 = vmatpush.xpose.msra.mxu0 0.0
    %925 = vmatpush.xpose.msra.mxu0 0.0
    %926 = vmatpush.xpose.msra.mxu0 0.0
    %927 = vmatpush.xpose.msra.mxu0 0.0
    %928 = vmatpush.xpose.msra.mxu0 0.0
    %929 = vmatpush.xpose.msra.mxu0 0.0
    %930 = vmatpush.xpose.msra.mxu0 0.0
    %931 = vmatpush.xpose.msra.mxu0 %v914
    %932 = vmatmul.f32.gmra.mxu0 %v912
    %v933 = vpop.f32.mrf.mxu0
    %v934 = vadd.f32 %v662, %v933
    %935 = vdwg.mxu0
    %v936 = vsel %vm327, %v934, -inf
    %937 = vmax.xlane.f32.xlu0 %v936
    %v938 = vpop.xlane.xlu0 %937
    %v939 = vsub.f32 %v934, %v938
    %v940 = vmul.f32 %v939, 1.442695
    %v941 = vpow.pop %v940
    %v942 = vsel %vm327, %v941, 0.0
    %943 = vadd.xlane.f32.xlu0 %v942
    %v944 = vpop.xlane.xlu0 %943
    %v945 = vrcp.pop %v944
    %v946 = vmul.f32 %v944, %v945
    %v947 = vsub.f32 1.0, %v946
    %v948 = vmul.f32 %v945, %v947
    %v949 = vadd.f32 %v945, %v948
    %vm950 = vweird.f32 %v944
    %vm951 = vweird.f32 %v945
    %vm952 = vmor %vm950, %vm951
    %v953 = vsel %vm952, %v945, %v949
    %v954 = vand.u32 2147483647, %v944
    %vm955 = vcmp.eq.f32.partialorder %v954, 8.507059e+37
    %v956 = vand.u32 %v944, 2147483648
    %v957 = vor.u32 1.1754944e-38, %v956
    %v958 = vsel %vm955, %v957, %v953
    %v959 = vmul.f32 %v941, %v958
    %v960 = vmul.f32 %v959, %v174
    %961 = vrot.lane.b32.xlu0 %v321, 104
    %v962 = vpop.permute.xlu0 %961
    %v965 = vsel %vm327, %v960, 0
    %967 = vmatpush.msra.mxu0 0.0
    %968 = vmatpush.msra.mxu0 0.0
    %969 = vmatpush.msra.mxu0 0.0
    %970 = vmatpush.msra.mxu0 0.0
    %971 = vmatpush.msra.mxu0 0.0
    %972 = vmatpush.msra.mxu0 0.0
    %973 = vmatpush.msra.mxu0 0.0
    %974 = vmatpush.msra.mxu0 0.0
    %975 = vmatpush.msra.mxu0 0.0
    %976 = vmatpush.msra.mxu0 0.0
    %977 = vmatpush.msra.mxu0 0.0
    %978 = vmatpush.msra.mxu0 0.0
    %979 = vmatpush.msra.mxu0 0.0
    %980 = vmatpush.msra.mxu0 0.0
    %981 = vmatpush.msra.mxu0 0.0
    %982 = vmatpush.msra.mxu0 %v962
    %983 = vmatmul.f32.gmra.mxu0 %v965
    %v984 = vpop.f32.mrf.mxu0
    %v985 = vadd.f32 0.0, %v984
    %986 = vdwg.mxu0
    %988 = vrot.lane.b32.xlu0 %v985, 24
    %v989 = vpop.permute.xlu0 %988
    %991 = vst.msk [vmem:[#allocation2 + $0x8] sm:$0xff] %vm657, %v989
    %v992 = vld [vmem:[#allocation2] sm:$0xff]
    %v993 = vld [vmem:[#allocation2 + $0x8] sm:$0xff]
    %v994 = vld [vmem:[#allocation15] sm:$0xff]
    %v995 = vld [vmem:[#allocation15 + $0x8] sm:$0xff]
    %v996 = vld [vmem:[#allocation15 + $0x10] sm:$0xff]
    %v997 = vld [vmem:[#allocation15 + $0x18] sm:$0xff]
    %v998 = vld [vmem:[%s12] sm:$0x1]
    %v1000 = vperm.slane %v998, 0
    %v1003 = vsel %vm183, %v992, 0
    %v1006 = vsel %vm183, %v993, 0
    %v1009 = vsel %vm183, %v994, 0
    %v1012 = vsel %vm183, %v995, 0
    %v1015 = vsel %vm183, %v996, 0
    %v1018 = vsel %vm183, %v997, 0
    %1020 = vmatpush.xpose.msra.mxu0 0.0
    %1021 = vmatpush.xpose.msra.mxu0 0.0
    %1022 = vmatpush.xpose.msra.mxu0 0.0
    %1023 = vmatpush.xpose.msra.mxu0 0.0
    %1024 = vmatpush.xpose.msra.mxu0 0.0
    %1025 = vmatpush.xpose.msra.mxu0 0.0
    %1026 = vmatpush.xpose.msra.mxu0 0.0
    %1027 = vmatpush.xpose.msra.mxu0 0.0
    %1028 = vmatpush.xpose.msra.mxu0 0.0
    %1029 = vmatpush.xpose.msra.mxu0 0.0
    %1030 = vmatpush.xpose.msra.mxu0 0.0
    %1031 = vmatpush.xpose.msra.mxu0 0.0
    %1032 = vmatpush.xpose.msra.mxu0 %v1018
    %1033 = vmatpush.xpose.msra.mxu0 %v1015
    %1034 = vmatpush.xpose.msra.mxu0 %v1012
    %1035 = vmatpush.xpose.msra.mxu0 %v1009
    %1036 = vmatmul.f32.gmra.mxu0 %v1003
    %v1037 = vpop.f32.mrf.mxu0
    %v1038 = vadd.f32 %v1000, %v1037
    %1039 = vmatmul.f32.gmra.mxu0 %v1006
    %v1040 = vpop.f32.mrf.mxu0
    %v1041 = vadd.f32 %v1000, %v1040
    %1042 = vdwg.mxu0
    %1043 = vst.msk [vmem:[#allocation17] sm:$0xff] %vm183, %v1038
    %1044 = vst.msk [vmem:[#allocation17 + $0x8] sm:$0xff] %vm183, %v1041
    // Predicated region
    $region86: #{tpu_custom_call.1} parent=1 // pred_check
      _
    $region87: #{tpu_custom_call.1} parent=1 // pred_check_branch
      %1046 = sbr.rel (0) target = $region89
    $region88: #{tpu_custom_call.1} parent=1 // pred_region
      %1048 = vsyncadd [#allocation5], 0
      %s1049 = sshll.u32 [#allocation17], 4
      %s1050 = int_to_ptr.vmem [resolvable:$true] %s1049
      %s1051 = sshll.u32 %s13, 4
      %s1052 = int_to_ptr.hbm [resolvable:$true] %s1051
      %1057 = dma.vmem_to_hbm [thread:$0]  %s1050, 256, %s1052, [#allocation5], 128, 128, 8
    $region89: #{tpu_custom_call.1} parent=1 // pred_fallthru
      _
    // Predicated region
    $region90: #{tpu_custom_call.1} parent=1 // pred_check
      _
    $region91: #{tpu_custom_call.1} parent=1 // pred_check_branch
      %1059 = sbr.rel (0) target = $region93
    $region92: #{tpu_custom_call.1} parent=1 // pred_region
      %1061 = dma.done [#allocation5], 256
    $region93: #{tpu_custom_call.1} parent=1 // pred_fallthru
      _
    %1062 = vsyncpa [#allocation4], 1
    %1063 = vsyncpa [#allocation7], 1
    %1064 = vsyncpa [#allocation10], 1
    %1065 = vsyncpa [#allocation13], 1
    %1066 = vsyncpa [#allocation16], 1
    %1067 = vsyncpa [#allocation5], 1

</llo_original>
